<compile_context>
chip_gen: v6e
topology: v6e:2x2x1
jax: 0.10.0
libtpu: 0.0.40
codegen_flags: <defaults>
</compile_context>

<pallas_src>
import math

import jax
import jax.numpy as jnp
from jax.experimental import pallas as pl
from jax.experimental.pallas import tpu as pltpu

# Small, module-consistent sizes.
B, S, D = 2, 8, 32          # batch, sequence_len, vector_dim
E = 32                      # embedding_dim
H = 8                       # n_heads (module default)
HD = E // H                 # head dim = 4
FF_EXP = 1                  # feedforward_expansion (module default)
FF = D * FF_EXP
N = B * S                   # folded batch*seq rows = 16
R = H * N                   # head-expanded score rows = 128
EPS = 1e-5


# ----------------------------- fused kernel ---------------------------------

def decoder_block_kernel(x_ref, venc_ref, kenc_ref, bias_ref, hmask_ref,
                         wmat_ref, vec_ref, out_ref):
    f32 = jnp.float32
    bf16 = jnp.bfloat16

    x = x_ref[...].astype(f32)         # (N, D) decoder input (batch folded)
    v_enc = venc_ref[...].astype(f32)  # (N, D) encoder output (values)
    k_enc = kenc_ref[...].astype(f32)  # (N, D) encoder output (keys)
    hm3 = hmask_ref[...].reshape(H, N, E)   # (H, N, E) bf16 head-block mask
    vec = vec_ref[...]                 # (16, D) f32 biases / LN gamma,beta

    def layernorm(y, g, b):            # f32 throughout
        mu = jnp.mean(y, axis=-1, keepdims=True)
        var = jnp.mean((y - mu) ** 2, axis=-1, keepdims=True)
        return (y - mu) * jax.lax.rsqrt(var + EPS) * g + b

    def mha(q_in, k_in, v_in, bias, wq, bq, wk, bk, wv, bv, wo, bo):
        # q_in/k_in/v_in : (N, D) f32 activations
        # wq/wk/wv (D,E) bf16, wo (E,D) bf16, bq/bk/bv/bo (1,E)/(1,D) f32
        # bias : (R, N) f32 additive mask, pre-tiled over heads
        # Flat projections: contraction D = 32, one MXU push each.
        q = jnp.dot(q_in.astype(bf16), wq, preferred_element_type=f32) + bq   # (N,E)
        k = jnp.dot(k_in.astype(bf16), wk, preferred_element_type=f32) + bk   # (N,E)
        v = jnp.dot(v_in.astype(bf16), wv, preferred_element_type=f32) + bv   # (N,E)
        # Block-diagonal Q: row h*N+i keeps only head h's HD columns of q[i].
        q_bd = (hm3 * q.astype(bf16)).reshape(R, E)                           # (R,E) bf16
        # ONE score matmul for all heads, contraction E = 32:
        #   s[h*N+i, j] = sum_f q[i, h*HD+f] * k[j, h*HD+f]   (1/sqrt(HD) pre-folded)
        s = jnp.einsum('re,ke->rk', q_bd, k.astype(bf16),
                       preferred_element_type=f32)                            # (R,N)
        s = s + bias                                                          # f32 mask
        m = jnp.max(s, axis=-1, keepdims=True)
        e = jnp.exp(s - m)
        p = e * pl.reciprocal(jnp.sum(e, axis=-1, keepdims=True), approx=True)
        # ONE PV matmul for all heads (contraction N=16), then masked head-collapse:
        #   o_cat[i, e] = sum_j p[e//HD, i, j] * v[j, e]
        o_bd = jnp.dot(p.astype(bf16), v.astype(bf16),
                       preferred_element_type=f32)                            # (R,E)
        o_cat = jnp.sum(o_bd.reshape(H, N, E) * hm3, axis=0)                  # (N,E)
        # Output projection fuses the per-head sum (contraction E = 32).
        return jnp.dot(o_cat.astype(bf16), wo, preferred_element_type=f32) + bo

    # --- masked self-attention + residual + layernorm (dropout = identity) ---
    msk = mha(x, x, x, bias_ref[0],
              wmat_ref[0], vec[0:1], wmat_ref[1], vec[1:2],
              wmat_ref[2], vec[2:3], wmat_ref[3], vec[3:4])
    x1 = layernorm(msk + x, vec[4:5], vec[5:6])

    # --- cross-attention (q = x1, k/v from encoder) + residual + layernorm ---
    att = mha(x1, k_enc, v_enc, bias_ref[1],
              wmat_ref[4], vec[6:7], wmat_ref[5], vec[7:8],
              wmat_ref[6], vec[8:9], wmat_ref[7], vec[9:10])
    x2 = layernorm(att + x1, vec[10:11], vec[11:12])

    # --- position-wise feed-forward + residual + layernorm ------------------
    h = jnp.maximum(
        jnp.dot(x2.astype(bf16), wmat_ref[8], preferred_element_type=f32) + vec[12:13],
        0.0)
    ff = jnp.dot(h.astype(bf16), wmat_ref[9], preferred_element_type=f32) + vec[13:14]
    out = layernorm(ff + x2, vec[14:15], vec[15:16])

    out_ref[...] = out.astype(out_ref.dtype)


# ----------------------------- parameters -----------------------------------

def init_params(key):
    """Module-style parameter list (weights (D,E)/(E,D), 1-D biases/gamma/beta)."""
    ks = jax.random.split(key, 26)

    def w(k, shape):
        return jax.random.normal(k, shape, jnp.float32) * 0.05

    def v(k, n, s=0.05):
        return jax.random.normal(k, (n,), jnp.float32) * s

    def gamma(k, n):
        return 1.0 + 0.1 * jax.random.normal(k, (n,), jnp.float32)

    return [
        # --- MaskedAttentionBlock ---
        w(ks[0], (D, E)), v(ks[1], E),      # wq1, bq1
        w(ks[2], (D, E)), v(ks[3], E),      # wk1, bk1
        w(ks[4], (D, E)), v(ks[5], E),      # wv1, bv1
        w(ks[6], (E, D)), v(ks[7], D),      # wo1, bo1
        gamma(ks[8], D), v(ks[9], D),       # g1, be1
        # --- AttentionBlock (cross) ---
        w(ks[10], (D, E)), v(ks[11], E),    # wq2, bq2
        w(ks[12], (D, E)), v(ks[13], E),    # wk2, bk2
        w(ks[14], (D, E)), v(ks[15], E),    # wv2, bv2
        w(ks[16], (E, D)), v(ks[17], D),    # wo2, bo2
        gamma(ks[18], D), v(ks[19], D),     # g2, be2
        # --- FeedForwardBlock ---
        w(ks[20], (D, FF)), v(ks[21], FF),  # wf1, bf1
        w(ks[22], (FF, D)), v(ks[23], D),   # wf2, bf2
        gamma(ks[24], D), v(ks[25], D),     # g3, be3
    ]


def pack_params(params):
    """One-time re-layout (call OUTSIDE the hot path).

    Returns a dense bf16 weight slab (10, D, E) and a f32 vector slab (16, D).
    The 1/sqrt(HD) attention scale is folded into the Q weights and biases.
    """
    (wq1, bq1, wk1, bk1, wv1, bv1, wo1, bo1, g1, be1,
     wq2, bq2, wk2, bk2, wv2, bv2, wo2, bo2, g2, be2,
     wf1, bf1, wf2, bf2, g3, be3) = params
    # TODO(synk): uniform (32,32) slab stacking assumes D == E == FF; pad/split otherwise.
    assert D == E == FF, "slab packing assumes vector_dim == embedding_dim == ff dim"
    scale = 1.0 / math.sqrt(HD)
    wmat = jnp.stack([wq1 * scale, wk1, wv1, wo1,
                      wq2 * scale, wk2, wv2, wo2,
                      wf1, wf2]).astype(jnp.bfloat16)              # (10, 32, 32)
    vecs = jnp.stack([bq1 * scale, bk1, bv1, bo1, g1, be1,
                      bq2 * scale, bk2, bv2, bo2, g2, be2,
                      bf1, bf2, g3, be3]).astype(jnp.float32)      # (16, 32)
    return wmat, vecs


def build_attn_bias(mask):
    """Additive score biases, pre-tiled over heads (one-time, static mask).

    mask: (B, S, S), 1 = attend, 0 = masked.
    Returns (2, R, N) f32: [0] self-attn (user mask AND same-batch block),
                           [1] cross-attn (same-batch block only).
    Off-diagonal batch entries get -1e9 so exp underflows to exactly 0.
    """
    eye = jnp.eye(B, dtype=jnp.float32)[:, None, :, None]              # (B,1,B,1)
    keep_self = (eye * mask.astype(jnp.float32)[:, :, None, :]).reshape(N, N)
    keep_cross = jnp.broadcast_to(eye, (B, S, B, S)).reshape(N, N)
    neg = jnp.float32(-1e9)
    b_self = jnp.where(keep_self == 0.0, neg, 0.0)
    b_cross = jnp.where(keep_cross == 0.0, neg, 0.0)
    return jnp.stack([jnp.tile(b_self, (H, 1)),
                      jnp.tile(b_cross, (H, 1))]).astype(jnp.float32)  # (2, R, N)


def build_head_mask():
    """(R, E) bf16 block mask: row h*N+i keeps columns [h*HD, (h+1)*HD)."""
    r = jnp.arange(R)[:, None] // N        # row -> head
    c = jnp.arange(E)[None, :] // HD       # col -> head
    return (r == c).astype(jnp.bfloat16)


# ----------------------------- wrapper ---------------------------------------

@jax.jit
def decoder_block(seqs, v_seqs, k_seqs, bias, hmask, wmat, vecs):
    """seqs/v_seqs/k_seqs: (B,S,D); bias/hmask/wmat/vecs: pre-packed (see pack_*)."""
    x2d = seqs.reshape(N, D)
    v2d = v_seqs.reshape(N, D)
    k2d = k_seqs.reshape(N, D)

    vspec = pl.BlockSpec(memory_space=pltpu.MemorySpace.VMEM)
    out = pl.pallas_call(
        decoder_block_kernel,
        out_shape=jax.ShapeDtypeStruct((N, D), seqs.dtype),
        in_specs=[vspec] * 7,
        out_specs=vspec,
    )(x2d, v2d, k2d, bias, hmask, wmat, vecs)
    return out.reshape(B, S, D)


# ----------------------------- pure-JAX reference (f32) ----------------------

def _ref_mha(v_in, k_in, q_in, mask, wq, bq, wk, bk, wv, bv, wo, bo):
    q = q_in @ wq + bq
    k = k_in @ wk + bk
    v = v_in @ wv + bv
    qh = q.reshape(S, H, HD).transpose(1, 0, 2)
    kh = k.reshape(S, H, HD).transpose(1, 0, 2)
    vh = v.reshape(S, H, HD).transpose(1, 0, 2)
    s = jnp.einsum("hqd,hkd->hqk", qh, kh) / math.sqrt(HD)
    if mask is not None:
        s = jnp.where(mask[None] == 0.0, -1e9, s)
    p = jax.nn.softmax(s, axis=-1)
    o = jnp.einsum("hqk,hkd->hqd", p, vh).transpose(1, 0, 2).reshape(S, E)
    return o @ wo + bo


def _ref_ln(x, g, b):
    mu = jnp.mean(x, -1, keepdims=True)
    var = jnp.mean((x - mu) ** 2, -1, keepdims=True)
    return (x - mu) / jnp.sqrt(var + EPS) * g + b


def decoder_block_ref(seqs, v_seqs, k_seqs, mask, params):
    (wq1, bq1, wk1, bk1, wv1, bv1, wo1, bo1, g1, be1,
     wq2, bq2, wk2, bk2, wv2, bv2, wo2, bo2, g2, be2,
     wf1, bf1, wf2, bf2, g3, be3) = params

    def one(x, v_enc, k_enc, m):
        msk = _ref_mha(x, x, x, m, wq1, bq1, wk1, bk1, wv1, bv1, wo1, bo1)
        x1 = _ref_ln(msk + x, g1, be1)
        att = _ref_mha(v_enc, k_enc, x1, None,
                       wq2, bq2, wk2, bk2, wv2, bv2, wo2, bo2)
        x2 = _ref_ln(att + x1, g2, be2)
        h = jax.nn.relu(x2 @ wf1 + bf1)
        ff = h @ wf2 + bf2
        return _ref_ln(ff + x2, g3, be3)

    return jax.vmap(one)(seqs, v_seqs, k_seqs, mask)


# ----------------------------- main -------------------------------------------

if __name__ == "__main__":
    key = jax.random.PRNGKey(0)
    k_seq, k_v, k_k, k_p = jax.random.split(key, 4)

    seqs = jax.random.normal(k_seq, (B, S, D), jnp.float32)
    v_seqs = jax.random.normal(k_v, (B, S, D), jnp.float32)
    k_seqs = jax.random.normal(k_k, (B, S, D), jnp.float32)
    # causal mask, 1 = attend, 0 = masked
    mask = jnp.broadcast_to(jnp.tril(jnp.ones((S, S), jnp.float32)), (B, S, S))

    params = init_params(k_p)

    # One-time packing, hoisted OUT of the per-call jitted path.
    wmat, vecs = pack_params(params)
    bias = build_attn_bias(mask)
    hmask = build_head_mask()
    wmat, vecs, bias, hmask = jax.block_until_ready((wmat, vecs, bias, hmask))

    out = decoder_block(seqs, v_seqs, k_seqs, bias, hmask, wmat, vecs)
    out = jax.block_until_ready(out)

    ref = decoder_block_ref(seqs, v_seqs, k_seqs, mask, params)
    assert out.shape == (B, S, D)
    # bf16 MXU operands (f32 accumulation) -> compare against the f32 reference
    # with a bf16-appropriate tolerance.
    err = jnp.max(jnp.abs(out - ref))
    assert jnp.allclose(out, ref, atol=2e-2, rtol=2e-2), f"max abs err {err}"

    print("KERNEL_OK")
</pallas_src>

<mosaic_0001>
module attributes {stable_mosaic.version = 11 : i64} {
  func.func @decoder_block_kernel(%arg0: memref<16x32xf32, #tpu.memory_space<vmem>>, %arg1: memref<16x32xf32, #tpu.memory_space<vmem>>, %arg2: memref<16x32xf32, #tpu.memory_space<vmem>>, %arg3: memref<2x128x16xf32, #tpu.memory_space<vmem>>, %arg4: memref<128x32xbf16, #tpu.memory_space<vmem>>, %arg5: memref<10x32x32xbf16, #tpu.memory_space<vmem>>, %arg6: memref<16x32xf32, #tpu.memory_space<vmem>>, %arg7: memref<16x32xf32, #tpu.memory_space<vmem>>) attributes {dimension_semantics = [], scalar_prefetch = 0 : i64, scratch_operands = 0 : i64, tpu.core_type = #tpu.core_type<tc>} {
    %c0 = arith.constant 0 : index
    %c0_0 = arith.constant 0 : index
    %0 = vector.load %arg0[%c0, %c0_0] : memref<16x32xf32, #tpu.memory_space<vmem>>, vector<16x32xf32>
    %c0_1 = arith.constant 0 : index
    %c0_2 = arith.constant 0 : index
    %1 = vector.load %arg1[%c0_1, %c0_2] : memref<16x32xf32, #tpu.memory_space<vmem>>, vector<16x32xf32>
    %c0_3 = arith.constant 0 : index
    %c0_4 = arith.constant 0 : index
    %2 = vector.load %arg2[%c0_3, %c0_4] : memref<16x32xf32, #tpu.memory_space<vmem>>, vector<16x32xf32>
    %c0_5 = arith.constant 0 : index
    %c0_6 = arith.constant 0 : index
    %3 = vector.load %arg4[%c0_5, %c0_6] : memref<128x32xbf16, #tpu.memory_space<vmem>>, vector<128x32xbf16>
    %4 = vector.shape_cast %3 : vector<128x32xbf16> to vector<8x16x32xbf16>
    %c0_7 = arith.constant 0 : index
    %c0_8 = arith.constant 0 : index
    %5 = vector.load %arg6[%c0_7, %c0_8] : memref<16x32xf32, #tpu.memory_space<vmem>>, vector<16x32xf32>
    %c0_9 = arith.constant 0 : index
    %c0_10 = arith.constant 0 : index
    %c0_11 = arith.constant 0 : index
    %6 = vector.load %arg3[%c0_9, %c0_10, %c0_11] : memref<2x128x16xf32, #tpu.memory_space<vmem>>, vector<1x128x16xf32>
    %7 = vector.shape_cast %6 : vector<1x128x16xf32> to vector<128x16xf32>
    %c0_12 = arith.constant 0 : index
    %c0_13 = arith.constant 0 : index
    %c0_14 = arith.constant 0 : index
    %8 = vector.load %arg5[%c0_12, %c0_13, %c0_14] : memref<10x32x32xbf16, #tpu.memory_space<vmem>>, vector<1x32x32xbf16>
    %9 = vector.shape_cast %8 : vector<1x32x32xbf16> to vector<32x32xbf16>
    %10 = vector.extract_strided_slice %5 {offsets = [0, 0], sizes = [1, 32], strides = [1, 1]} : vector<16x32xf32> to vector<1x32xf32>
    %c1 = arith.constant 1 : index
    %c0_15 = arith.constant 0 : index
    %c0_16 = arith.constant 0 : index
    %11 = vector.load %arg5[%c1, %c0_15, %c0_16] : memref<10x32x32xbf16, #tpu.memory_space<vmem>>, vector<1x32x32xbf16>
    %12 = vector.shape_cast %11 : vector<1x32x32xbf16> to vector<32x32xbf16>
    %13 = vector.extract_strided_slice %5 {offsets = [1, 0], sizes = [1, 32], strides = [1, 1]} : vector<16x32xf32> to vector<1x32xf32>
    %c2 = arith.constant 2 : index
    %c0_17 = arith.constant 0 : index
    %c0_18 = arith.constant 0 : index
    %14 = vector.load %arg5[%c2, %c0_17, %c0_18] : memref<10x32x32xbf16, #tpu.memory_space<vmem>>, vector<1x32x32xbf16>
    %15 = vector.shape_cast %14 : vector<1x32x32xbf16> to vector<32x32xbf16>
    %16 = vector.extract_strided_slice %5 {offsets = [2, 0], sizes = [1, 32], strides = [1, 1]} : vector<16x32xf32> to vector<1x32xf32>
    %c3 = arith.constant 3 : index
    %c0_19 = arith.constant 0 : index
    %c0_20 = arith.constant 0 : index
    %17 = vector.load %arg5[%c3, %c0_19, %c0_20] : memref<10x32x32xbf16, #tpu.memory_space<vmem>>, vector<1x32x32xbf16>
    %18 = vector.shape_cast %17 : vector<1x32x32xbf16> to vector<32x32xbf16>
    %19 = vector.extract_strided_slice %5 {offsets = [3, 0], sizes = [1, 32], strides = [1, 1]} : vector<16x32xf32> to vector<1x32xf32>
    %20 = arith.truncf %0 : vector<16x32xf32> to vector<16x32xbf16>
    %cst = arith.constant dense<0.000000e+00> : vector<16x32xf32>
    %21 = tpu.matmul %20, %9, %cst {dimension_numbers = #tpu.dot_dimension_numbers<[1], [0], [0], [1], [0, 0, 1, 1], [], []>} : vector<16x32xbf16>, vector<32x32xbf16>, vector<16x32xf32> -> vector<16x32xf32>
    %22 = vector.broadcast %10 : vector<1x32xf32> to vector<16x32xf32>
    %23 = arith.addf %21, %22 : vector<16x32xf32>
    %24 = arith.truncf %0 : vector<16x32xf32> to vector<16x32xbf16>
    %cst_21 = arith.constant dense<0.000000e+00> : vector<16x32xf32>
    %25 = tpu.matmul %24, %12, %cst_21 {dimension_numbers = #tpu.dot_dimension_numbers<[1], [0], [0], [1], [0, 0, 1, 1], [], []>} : vector<16x32xbf16>, vector<32x32xbf16>, vector<16x32xf32> -> vector<16x32xf32>
    %26 = vector.broadcast %13 : vector<1x32xf32> to vector<16x32xf32>
    %27 = arith.addf %25, %26 : vector<16x32xf32>
    %28 = arith.truncf %0 : vector<16x32xf32> to vector<16x32xbf16>
    %cst_22 = arith.constant dense<0.000000e+00> : vector<16x32xf32>
    %29 = tpu.matmul %28, %15, %cst_22 {dimension_numbers = #tpu.dot_dimension_numbers<[1], [0], [0], [1], [0, 0, 1, 1], [], []>} : vector<16x32xbf16>, vector<32x32xbf16>, vector<16x32xf32> -> vector<16x32xf32>
    %30 = vector.broadcast %16 : vector<1x32xf32> to vector<16x32xf32>
    %31 = arith.addf %29, %30 : vector<16x32xf32>
    %32 = arith.truncf %23 : vector<16x32xf32> to vector<16x32xbf16>
    %33 = vector.shape_cast %32 : vector<16x32xbf16> to vector<1x16x32xbf16>
    %34 = vector.broadcast %33 : vector<1x16x32xbf16> to vector<8x16x32xbf16>
    %35 = arith.mulf %4, %34 : vector<8x16x32xbf16>
    %36 = vector.shape_cast %35 : vector<8x16x32xbf16> to vector<128x32xbf16>
    %37 = arith.truncf %27 : vector<16x32xf32> to vector<16x32xbf16>
    "tpu.trace_start"() <{level = 10 : i32, message = "re,ke->rk"}> : () -> ()
    %cst_23 = arith.constant dense<0.000000e+00> : vector<128x16xf32>
    %38 = tpu.matmul %36, %37, %cst_23 {dimension_numbers = #tpu.dot_dimension_numbers<[1], [1], [0], [0], [0, 0, 1, 0], [], []>} : vector<128x32xbf16>, vector<16x32xbf16>, vector<128x16xf32> -> vector<128x16xf32>
    "tpu.trace_stop"() : () -> ()
    %39 = arith.addf %38, %7 : vector<128x16xf32>
    %cst_24 = arith.constant dense<0xFF800000> : vector<128xf32>
    %40 = vector.multi_reduction <maximumf>, %39, %cst_24 [1] : vector<128x16xf32> to vector<128xf32>
    %41 = vector.shape_cast %40 : vector<128xf32> to vector<128x1xf32>
    %42 = vector.broadcast %41 : vector<128x1xf32> to vector<128x16xf32>
    %43 = arith.subf %39, %42 : vector<128x16xf32>
    %44 = math.exp %43 : vector<128x16xf32>
    %cst_25 = arith.constant dense<0.000000e+00> : vector<128xf32>
    %45 = vector.multi_reduction <add>, %44, %cst_25 [1] : vector<128x16xf32> to vector<128xf32>
    %46 = vector.shape_cast %45 : vector<128xf32> to vector<128x1xf32>
    %47 = tpu.reciprocal %46 {approx = true} : vector<128x1xf32> -> vector<128x1xf32>
    %48 = vector.broadcast %47 : vector<128x1xf32> to vector<128x16xf32>
    %49 = arith.mulf %44, %48 : vector<128x16xf32>
    %50 = arith.truncf %49 : vector<128x16xf32> to vector<128x16xbf16>
    %51 = arith.truncf %31 : vector<16x32xf32> to vector<16x32xbf16>
    %cst_26 = arith.constant dense<0.000000e+00> : vector<128x32xf32>
    %52 = tpu.matmul %50, %51, %cst_26 {dimension_numbers = #tpu.dot_dimension_numbers<[1], [0], [0], [1], [0, 0, 1, 1], [], []>} : vector<128x16xbf16>, vector<16x32xbf16>, vector<128x32xf32> -> vector<128x32xf32>
    %53 = vector.shape_cast %52 : vector<128x32xf32> to vector<8x16x32xf32>
    %54 = arith.extf %4 : vector<8x16x32xbf16> to vector<8x16x32xf32>
    %55 = arith.mulf %53, %54 : vector<8x16x32xf32>
    %cst_27 = arith.constant dense<0.000000e+00> : vector<16x32xf32>
    %56 = vector.multi_reduction <add>, %55, %cst_27 [0] : vector<8x16x32xf32> to vector<16x32xf32>
    %57 = arith.truncf %56 : vector<16x32xf32> to vector<16x32xbf16>
    %cst_28 = arith.constant dense<0.000000e+00> : vector<16x32xf32>
    %58 = tpu.matmul %57, %18, %cst_28 {dimension_numbers = #tpu.dot_dimension_numbers<[1], [0], [0], [1], [0, 0, 1, 1], [], []>} : vector<16x32xbf16>, vector<32x32xbf16>, vector<16x32xf32> -> vector<16x32xf32>
    %59 = vector.broadcast %19 : vector<1x32xf32> to vector<16x32xf32>
    %60 = arith.addf %58, %59 : vector<16x32xf32>
    %61 = arith.addf %60, %0 : vector<16x32xf32>
    %62 = vector.extract_strided_slice %5 {offsets = [4, 0], sizes = [1, 32], strides = [1, 1]} : vector<16x32xf32> to vector<1x32xf32>
    %63 = vector.extract_strided_slice %5 {offsets = [5, 0], sizes = [1, 32], strides = [1, 1]} : vector<16x32xf32> to vector<1x32xf32>
    %cst_29 = arith.constant dense<0.000000e+00> : vector<16xf32>
    %64 = vector.multi_reduction <add>, %61, %cst_29 [1] : vector<16x32xf32> to vector<16xf32>
    %65 = vector.shape_cast %64 : vector<16xf32> to vector<16x1xf32>
    %cst_30 = arith.constant 3.200000e+01 : f32
    %66 = vector.broadcast %cst_30 : f32 to vector<16x1xf32>
    %67 = arith.divf %65, %66 : vector<16x1xf32>
    %68 = vector.broadcast %67 : vector<16x1xf32> to vector<16x32xf32>
    %69 = arith.subf %61, %68 : vector<16x32xf32>
    %70 = arith.mulf %69, %69 : vector<16x32xf32>
    %cst_31 = arith.constant dense<0.000000e+00> : vector<16xf32>
    %71 = vector.multi_reduction <add>, %70, %cst_31 [1] : vector<16x32xf32> to vector<16xf32>
    %72 = vector.shape_cast %71 : vector<16xf32> to vector<16x1xf32>
    %cst_32 = arith.constant 3.200000e+01 : f32
    %73 = vector.broadcast %cst_32 : f32 to vector<16x1xf32>
    %74 = arith.divf %72, %73 : vector<16x1xf32>
    %75 = vector.broadcast %67 : vector<16x1xf32> to vector<16x32xf32>
    %76 = arith.subf %61, %75 : vector<16x32xf32>
    %cst_33 = arith.constant 9.99999974E-6 : f32
    %77 = vector.broadcast %cst_33 : f32 to vector<16x1xf32>
    %78 = arith.addf %74, %77 : vector<16x1xf32>
    %79 = math.rsqrt %78 : vector<16x1xf32>
    %80 = vector.broadcast %79 : vector<16x1xf32> to vector<16x32xf32>
    %81 = arith.mulf %76, %80 : vector<16x32xf32>
    %82 = vector.broadcast %62 : vector<1x32xf32> to vector<16x32xf32>
    %83 = arith.mulf %81, %82 : vector<16x32xf32>
    %84 = vector.broadcast %63 : vector<1x32xf32> to vector<16x32xf32>
    %85 = arith.addf %83, %84 : vector<16x32xf32>
    %c1_34 = arith.constant 1 : index
    %c0_35 = arith.constant 0 : index
    %c0_36 = arith.constant 0 : index
    %86 = vector.load %arg3[%c1_34, %c0_35, %c0_36] : memref<2x128x16xf32, #tpu.memory_space<vmem>>, vector<1x128x16xf32>
    %87 = vector.shape_cast %86 : vector<1x128x16xf32> to vector<128x16xf32>
    %c4 = arith.constant 4 : index
    %c0_37 = arith.constant 0 : index
    %c0_38 = arith.constant 0 : index
    %88 = vector.load %arg5[%c4, %c0_37, %c0_38] : memref<10x32x32xbf16, #tpu.memory_space<vmem>>, vector<1x32x32xbf16>
    %89 = vector.shape_cast %88 : vector<1x32x32xbf16> to vector<32x32xbf16>
    %90 = vector.extract_strided_slice %5 {offsets = [6, 0], sizes = [1, 32], strides = [1, 1]} : vector<16x32xf32> to vector<1x32xf32>
    %c5 = arith.constant 5 : index
    %c0_39 = arith.constant 0 : index
    %c0_40 = arith.constant 0 : index
    %91 = vector.load %arg5[%c5, %c0_39, %c0_40] : memref<10x32x32xbf16, #tpu.memory_space<vmem>>, vector<1x32x32xbf16>
    %92 = vector.shape_cast %91 : vector<1x32x32xbf16> to vector<32x32xbf16>
    %93 = vector.extract_strided_slice %5 {offsets = [7, 0], sizes = [1, 32], strides = [1, 1]} : vector<16x32xf32> to vector<1x32xf32>
    %c6 = arith.constant 6 : index
    %c0_41 = arith.constant 0 : index
    %c0_42 = arith.constant 0 : index
    %94 = vector.load %arg5[%c6, %c0_41, %c0_42] : memref<10x32x32xbf16, #tpu.memory_space<vmem>>, vector<1x32x32xbf16>
    %95 = vector.shape_cast %94 : vector<1x32x32xbf16> to vector<32x32xbf16>
    %96 = vector.extract_strided_slice %5 {offsets = [8, 0], sizes = [1, 32], strides = [1, 1]} : vector<16x32xf32> to vector<1x32xf32>
    %c7 = arith.constant 7 : index
    %c0_43 = arith.constant 0 : index
    %c0_44 = arith.constant 0 : index
    %97 = vector.load %arg5[%c7, %c0_43, %c0_44] : memref<10x32x32xbf16, #tpu.memory_space<vmem>>, vector<1x32x32xbf16>
    %98 = vector.shape_cast %97 : vector<1x32x32xbf16> to vector<32x32xbf16>
    %99 = vector.extract_strided_slice %5 {offsets = [9, 0], sizes = [1, 32], strides = [1, 1]} : vector<16x32xf32> to vector<1x32xf32>
    %100 = arith.truncf %85 : vector<16x32xf32> to vector<16x32xbf16>
    %cst_45 = arith.constant dense<0.000000e+00> : vector<16x32xf32>
    %101 = tpu.matmul %100, %89, %cst_45 {dimension_numbers = #tpu.dot_dimension_numbers<[1], [0], [0], [1], [0, 0, 1, 1], [], []>} : vector<16x32xbf16>, vector<32x32xbf16>, vector<16x32xf32> -> vector<16x32xf32>
    %102 = vector.broadcast %90 : vector<1x32xf32> to vector<16x32xf32>
    %103 = arith.addf %101, %102 : vector<16x32xf32>
    %104 = arith.truncf %2 : vector<16x32xf32> to vector<16x32xbf16>
    %cst_46 = arith.constant dense<0.000000e+00> : vector<16x32xf32>
    %105 = tpu.matmul %104, %92, %cst_46 {dimension_numbers = #tpu.dot_dimension_numbers<[1], [0], [0], [1], [0, 0, 1, 1], [], []>} : vector<16x32xbf16>, vector<32x32xbf16>, vector<16x32xf32> -> vector<16x32xf32>
    %106 = vector.broadcast %93 : vector<1x32xf32> to vector<16x32xf32>
    %107 = arith.addf %105, %106 : vector<16x32xf32>
    %108 = arith.truncf %1 : vector<16x32xf32> to vector<16x32xbf16>
    %cst_47 = arith.constant dense<0.000000e+00> : vector<16x32xf32>
    %109 = tpu.matmul %108, %95, %cst_47 {dimension_numbers = #tpu.dot_dimension_numbers<[1], [0], [0], [1], [0, 0, 1, 1], [], []>} : vector<16x32xbf16>, vector<32x32xbf16>, vector<16x32xf32> -> vector<16x32xf32>
    %110 = vector.broadcast %96 : vector<1x32xf32> to vector<16x32xf32>
    %111 = arith.addf %109, %110 : vector<16x32xf32>
    %112 = arith.truncf %103 : vector<16x32xf32> to vector<16x32xbf16>
    %113 = vector.shape_cast %112 : vector<16x32xbf16> to vector<1x16x32xbf16>
    %114 = vector.broadcast %113 : vector<1x16x32xbf16> to vector<8x16x32xbf16>
    %115 = arith.mulf %4, %114 : vector<8x16x32xbf16>
    %116 = vector.shape_cast %115 : vector<8x16x32xbf16> to vector<128x32xbf16>
    %117 = arith.truncf %107 : vector<16x32xf32> to vector<16x32xbf16>
    "tpu.trace_start"() <{level = 10 : i32, message = "re,ke->rk"}> : () -> ()
    %cst_48 = arith.constant dense<0.000000e+00> : vector<128x16xf32>
    %118 = tpu.matmul %116, %117, %cst_48 {dimension_numbers = #tpu.dot_dimension_numbers<[1], [1], [0], [0], [0, 0, 1, 0], [], []>} : vector<128x32xbf16>, vector<16x32xbf16>, vector<128x16xf32> -> vector<128x16xf32>
    "tpu.trace_stop"() : () -> ()
    %119 = arith.addf %118, %87 : vector<128x16xf32>
    %cst_49 = arith.constant dense<0xFF800000> : vector<128xf32>
    %120 = vector.multi_reduction <maximumf>, %119, %cst_49 [1] : vector<128x16xf32> to vector<128xf32>
    %121 = vector.shape_cast %120 : vector<128xf32> to vector<128x1xf32>
    %122 = vector.broadcast %121 : vector<128x1xf32> to vector<128x16xf32>
    %123 = arith.subf %119, %122 : vector<128x16xf32>
    %124 = math.exp %123 : vector<128x16xf32>
    %cst_50 = arith.constant dense<0.000000e+00> : vector<128xf32>
    %125 = vector.multi_reduction <add>, %124, %cst_50 [1] : vector<128x16xf32> to vector<128xf32>
    %126 = vector.shape_cast %125 : vector<128xf32> to vector<128x1xf32>
    %127 = tpu.reciprocal %126 {approx = true} : vector<128x1xf32> -> vector<128x1xf32>
    %128 = vector.broadcast %127 : vector<128x1xf32> to vector<128x16xf32>
    %129 = arith.mulf %124, %128 : vector<128x16xf32>
    %130 = arith.truncf %129 : vector<128x16xf32> to vector<128x16xbf16>
    %131 = arith.truncf %111 : vector<16x32xf32> to vector<16x32xbf16>
    %cst_51 = arith.constant dense<0.000000e+00> : vector<128x32xf32>
    %132 = tpu.matmul %130, %131, %cst_51 {dimension_numbers = #tpu.dot_dimension_numbers<[1], [0], [0], [1], [0, 0, 1, 1], [], []>} : vector<128x16xbf16>, vector<16x32xbf16>, vector<128x32xf32> -> vector<128x32xf32>
    %133 = vector.shape_cast %132 : vector<128x32xf32> to vector<8x16x32xf32>
    %134 = arith.extf %4 : vector<8x16x32xbf16> to vector<8x16x32xf32>
    %135 = arith.mulf %133, %134 : vector<8x16x32xf32>
    %cst_52 = arith.constant dense<0.000000e+00> : vector<16x32xf32>
    %136 = vector.multi_reduction <add>, %135, %cst_52 [0] : vector<8x16x32xf32> to vector<16x32xf32>
    %137 = arith.truncf %136 : vector<16x32xf32> to vector<16x32xbf16>
    %cst_53 = arith.constant dense<0.000000e+00> : vector<16x32xf32>
    %138 = tpu.matmul %137, %98, %cst_53 {dimension_numbers = #tpu.dot_dimension_numbers<[1], [0], [0], [1], [0, 0, 1, 1], [], []>} : vector<16x32xbf16>, vector<32x32xbf16>, vector<16x32xf32> -> vector<16x32xf32>
    %139 = vector.broadcast %99 : vector<1x32xf32> to vector<16x32xf32>
    %140 = arith.addf %138, %139 : vector<16x32xf32>
    %141 = arith.addf %140, %85 : vector<16x32xf32>
    %142 = vector.extract_strided_slice %5 {offsets = [10, 0], sizes = [1, 32], strides = [1, 1]} : vector<16x32xf32> to vector<1x32xf32>
    %143 = vector.extract_strided_slice %5 {offsets = [11, 0], sizes = [1, 32], strides = [1, 1]} : vector<16x32xf32> to vector<1x32xf32>
    %cst_54 = arith.constant dense<0.000000e+00> : vector<16xf32>
    %144 = vector.multi_reduction <add>, %141, %cst_54 [1] : vector<16x32xf32> to vector<16xf32>
    %145 = vector.shape_cast %144 : vector<16xf32> to vector<16x1xf32>
    %cst_55 = arith.constant 3.200000e+01 : f32
    %146 = vector.broadcast %cst_55 : f32 to vector<16x1xf32>
    %147 = arith.divf %145, %146 : vector<16x1xf32>
    %148 = vector.broadcast %147 : vector<16x1xf32> to vector<16x32xf32>
    %149 = arith.subf %141, %148 : vector<16x32xf32>
    %150 = arith.mulf %149, %149 : vector<16x32xf32>
    %cst_56 = arith.constant dense<0.000000e+00> : vector<16xf32>
    %151 = vector.multi_reduction <add>, %150, %cst_56 [1] : vector<16x32xf32> to vector<16xf32>
    %152 = vector.shape_cast %151 : vector<16xf32> to vector<16x1xf32>
    %cst_57 = arith.constant 3.200000e+01 : f32
    %153 = vector.broadcast %cst_57 : f32 to vector<16x1xf32>
    %154 = arith.divf %152, %153 : vector<16x1xf32>
    %155 = vector.broadcast %147 : vector<16x1xf32> to vector<16x32xf32>
    %156 = arith.subf %141, %155 : vector<16x32xf32>
    %cst_58 = arith.constant 9.99999974E-6 : f32
    %157 = vector.broadcast %cst_58 : f32 to vector<16x1xf32>
    %158 = arith.addf %154, %157 : vector<16x1xf32>
    %159 = math.rsqrt %158 : vector<16x1xf32>
    %160 = vector.broadcast %159 : vector<16x1xf32> to vector<16x32xf32>
    %161 = arith.mulf %156, %160 : vector<16x32xf32>
    %162 = vector.broadcast %142 : vector<1x32xf32> to vector<16x32xf32>
    %163 = arith.mulf %161, %162 : vector<16x32xf32>
    %164 = vector.broadcast %143 : vector<1x32xf32> to vector<16x32xf32>
    %165 = arith.addf %163, %164 : vector<16x32xf32>
    %166 = arith.truncf %165 : vector<16x32xf32> to vector<16x32xbf16>
    %c8 = arith.constant 8 : index
    %c0_59 = arith.constant 0 : index
    %c0_60 = arith.constant 0 : index
    %167 = vector.load %arg5[%c8, %c0_59, %c0_60] : memref<10x32x32xbf16, #tpu.memory_space<vmem>>, vector<1x32x32xbf16>
    %168 = vector.shape_cast %167 : vector<1x32x32xbf16> to vector<32x32xbf16>
    %cst_61 = arith.constant dense<0.000000e+00> : vector<16x32xf32>
    %169 = tpu.matmul %166, %168, %cst_61 {dimension_numbers = #tpu.dot_dimension_numbers<[1], [0], [0], [1], [0, 0, 1, 1], [], []>} : vector<16x32xbf16>, vector<32x32xbf16>, vector<16x32xf32> -> vector<16x32xf32>
    %170 = vector.extract_strided_slice %5 {offsets = [12, 0], sizes = [1, 32], strides = [1, 1]} : vector<16x32xf32> to vector<1x32xf32>
    %171 = vector.broadcast %170 : vector<1x32xf32> to vector<16x32xf32>
    %172 = arith.addf %169, %171 : vector<16x32xf32>
    %cst_62 = arith.constant 0.000000e+00 : f32
    %173 = vector.broadcast %cst_62 : f32 to vector<16x32xf32>
    %174 = arith.maximumf %172, %173 : vector<16x32xf32>
    %175 = arith.truncf %174 : vector<16x32xf32> to vector<16x32xbf16>
    %c9 = arith.constant 9 : index
    %c0_63 = arith.constant 0 : index
    %c0_64 = arith.constant 0 : index
    %176 = vector.load %arg5[%c9, %c0_63, %c0_64] : memref<10x32x32xbf16, #tpu.memory_space<vmem>>, vector<1x32x32xbf16>
    %177 = vector.shape_cast %176 : vector<1x32x32xbf16> to vector<32x32xbf16>
    %cst_65 = arith.constant dense<0.000000e+00> : vector<16x32xf32>
    %178 = tpu.matmul %175, %177, %cst_65 {dimension_numbers = #tpu.dot_dimension_numbers<[1], [0], [0], [1], [0, 0, 1, 1], [], []>} : vector<16x32xbf16>, vector<32x32xbf16>, vector<16x32xf32> -> vector<16x32xf32>
    %179 = vector.extract_strided_slice %5 {offsets = [13, 0], sizes = [1, 32], strides = [1, 1]} : vector<16x32xf32> to vector<1x32xf32>
    %180 = vector.broadcast %179 : vector<1x32xf32> to vector<16x32xf32>
    %181 = arith.addf %178, %180 : vector<16x32xf32>
    %182 = arith.addf %181, %165 : vector<16x32xf32>
    %183 = vector.extract_strided_slice %5 {offsets = [14, 0], sizes = [1, 32], strides = [1, 1]} : vector<16x32xf32> to vector<1x32xf32>
    %184 = vector.extract_strided_slice %5 {offsets = [15, 0], sizes = [1, 32], strides = [1, 1]} : vector<16x32xf32> to vector<1x32xf32>
    %cst_66 = arith.constant dense<0.000000e+00> : vector<16xf32>
    %185 = vector.multi_reduction <add>, %182, %cst_66 [1] : vector<16x32xf32> to vector<16xf32>
    %186 = vector.shape_cast %185 : vector<16xf32> to vector<16x1xf32>
    %cst_67 = arith.constant 3.200000e+01 : f32
    %187 = vector.broadcast %cst_67 : f32 to vector<16x1xf32>
    %188 = arith.divf %186, %187 : vector<16x1xf32>
    %189 = vector.broadcast %188 : vector<16x1xf32> to vector<16x32xf32>
    %190 = arith.subf %182, %189 : vector<16x32xf32>
    %191 = arith.mulf %190, %190 : vector<16x32xf32>
    %cst_68 = arith.constant dense<0.000000e+00> : vector<16xf32>
    %192 = vector.multi_reduction <add>, %191, %cst_68 [1] : vector<16x32xf32> to vector<16xf32>
    %193 = vector.shape_cast %192 : vector<16xf32> to vector<16x1xf32>
    %cst_69 = arith.constant 3.200000e+01 : f32
    %194 = vector.broadcast %cst_69 : f32 to vector<16x1xf32>
    %195 = arith.divf %193, %194 : vector<16x1xf32>
    %196 = vector.broadcast %188 : vector<16x1xf32> to vector<16x32xf32>
    %197 = arith.subf %182, %196 : vector<16x32xf32>
    %cst_70 = arith.constant 9.99999974E-6 : f32
    %198 = vector.broadcast %cst_70 : f32 to vector<16x1xf32>
    %199 = arith.addf %195, %198 : vector<16x1xf32>
    %200 = math.rsqrt %199 : vector<16x1xf32>
    %201 = vector.broadcast %200 : vector<16x1xf32> to vector<16x32xf32>
    %202 = arith.mulf %197, %201 : vector<16x32xf32>
    %203 = vector.broadcast %183 : vector<1x32xf32> to vector<16x32xf32>
    %204 = arith.mulf %202, %203 : vector<16x32xf32>
    %205 = vector.broadcast %184 : vector<1x32xf32> to vector<16x32xf32>
    %206 = arith.addf %204, %205 : vector<16x32xf32>
    %c0_71 = arith.constant 0 : index
    %c0_72 = arith.constant 0 : index
    %207 = vector.load %arg7[%c0_71, %c0_72] : memref<16x32xf32, #tpu.memory_space<vmem>>, vector<16x32xf32>
    tpu.vector_store %arg7[%c0_71, %c0_72], %206 {strides = array<i32>} : memref<16x32xf32, #tpu.memory_space<vmem>>, vector<16x32xf32>,
    return
  }
}

</mosaic_0001>

<llo_original>
// kernel: decoder_block.1
$region0: #{decoder_block.1}
  #allocation0 [shape = 'u32[]', space=smem, size = 0x4, offset = 0x4, fixed_abs, tag = 'smem constant byte address 0x4 - core index']
  #allocation1 [shape = 'u32[144,128]{1,0:T(1,128)}', space=vmem, size = 0x12000, scoped, tag = 'internal scratch']
  %s0 = inlined_call_operand.vmem [shape: f32[16,32], index: 0, kind: input, shape index: {}]
  %s1 = inlined_call_operand.vmem [shape: f32[16,32], index: 1, kind: input, shape index: {}]
  %s2 = inlined_call_operand.vmem [shape: f32[16,32], index: 2, kind: input, shape index: {}]
  %s3 = inlined_call_operand.vmem [shape: f32[2,128,16], index: 3, kind: input, shape index: {}]
  %s4 = inlined_call_operand.vmem [shape: bf16[128,32], index: 4, kind: input, shape index: {}]
  %s5 = inlined_call_operand.vmem [shape: bf16[10,32,32], index: 5, kind: input, shape index: {}]
  %s6 = inlined_call_operand.vmem [shape: f32[16,32], index: 6, kind: input, shape index: {}]
  %s7 = inlined_call_operand.hbm [shape: f32[16,32], index: 7, kind: output, shape index: {}]
  %s8 = sld [smem:[#allocation0]]
  $region38: #{decoder_block.1} parent=0
    _
  %s10 = ssub.s32 1, %s8
  %s11 = scalar_select 0, %s10, %s8
  $region1: #{decoder_block.1} parent=0
    #allocation2 [shape = 'u8[8192]{0}', space=vmem, size = 0x2000, scoped, tag = 'output window, operand 0, single buffered']
    #allocation3 [shape = 's32[1]{0}', space=sflag, size = 0x4, scoped, tag = 'scoped memory for decoder_block.1']
    %12 = vsyncpa [#allocation3], 0
    // Predicated region
    $region2: #{decoder_block.1} parent=1 // pred_check
      _
    $region3: #{decoder_block.1} parent=1 // pred_check_branch
      %14 = sbr.rel (0) target = $region5
    $region4: #{decoder_block.1} parent=1 // pred_region
      _
    $region5: #{decoder_block.1} parent=1 // pred_fallthru
      _
    // Predicated region
    $region6: #{decoder_block.1} parent=1 // pred_check
      _
    $region7: #{decoder_block.1} parent=1 // pred_check_branch
      %16 = sbr.rel (0) target = $region9
    $region8: #{decoder_block.1} parent=1 // pred_region
      _
    $region9: #{decoder_block.1} parent=1 // pred_fallthru
      _
    // Predicated region
    $region10: #{decoder_block.1} parent=1 // pred_check
      _
    $region11: #{decoder_block.1} parent=1 // pred_check_branch
      %18 = sbr.rel (0) target = $region13
    $region12: #{decoder_block.1} parent=1 // pred_region
      _
    $region13: #{decoder_block.1} parent=1 // pred_fallthru
      _
    // Predicated region
    $region14: #{decoder_block.1} parent=1 // pred_check
      _
    $region15: #{decoder_block.1} parent=1 // pred_check_branch
      %20 = sbr.rel (0) target = $region17
    $region16: #{decoder_block.1} parent=1 // pred_region
      _
    $region17: #{decoder_block.1} parent=1 // pred_fallthru
      _
    // Predicated region
    $region18: #{decoder_block.1} parent=1 // pred_check
      _
    $region19: #{decoder_block.1} parent=1 // pred_check_branch
      %22 = sbr.rel (0) target = $region21
    $region20: #{decoder_block.1} parent=1 // pred_region
      _
    $region21: #{decoder_block.1} parent=1 // pred_fallthru
      _
    // Predicated region
    $region22: #{decoder_block.1} parent=1 // pred_check
      _
    $region23: #{decoder_block.1} parent=1 // pred_check_branch
      %24 = sbr.rel (0) target = $region25
    $region24: #{decoder_block.1} parent=1 // pred_region
      _
    $region25: #{decoder_block.1} parent=1 // pred_fallthru
      _
    // Predicated region
    $region26: #{decoder_block.1} parent=1 // pred_check
      _
    $region27: #{decoder_block.1} parent=1 // pred_check_branch
      %26 = sbr.rel (0) target = $region29
    $region28: #{decoder_block.1} parent=1 // pred_region
      _
    $region29: #{decoder_block.1} parent=1 // pred_fallthru
      _
    %v28 = vld [vmem:[%s0] sm:$0xff]
    %v29 = vld [vmem:[%s0 + $0x8] sm:$0xff]
    %v30 = vld [vmem:[%s1] sm:$0xff]
    %v31 = vld [vmem:[%s1 + $0x8] sm:$0xff]
    %v32 = vld [vmem:[%s2] sm:$0xff]
    %v33 = vld [vmem:[%s2 + $0x8] sm:$0xff]
    %v34 = vld [vmem:[%s4] sm:$0xf]
    %v35 = vld [vmem:[%s4 + $0x4] sm:$0xf]
    %v36 = vld [vmem:[%s4 + $0x8] sm:$0xf]
    %v37 = vld [vmem:[%s4 + $0xc] sm:$0xf]
    %v38 = vld [vmem:[%s4 + $0x10] sm:$0xf]
    %v39 = vld [vmem:[%s4 + $0x14] sm:$0xf]
    %v40 = vld [vmem:[%s4 + $0x18] sm:$0xf]
    %v41 = vld [vmem:[%s4 + $0x1c] sm:$0xf]
    %v42 = vld [vmem:[%s4 + $0x20] sm:$0xf]
    %v43 = vld [vmem:[%s4 + $0x24] sm:$0xf]
    %v44 = vld [vmem:[%s4 + $0x28] sm:$0xf]
    %v45 = vld [vmem:[%s4 + $0x2c] sm:$0xf]
    %v46 = vld [vmem:[%s4 + $0x30] sm:$0xf]
    %v47 = vld [vmem:[%s4 + $0x34] sm:$0xf]
    %v48 = vld [vmem:[%s4 + $0x38] sm:$0xf]
    %v49 = vld [vmem:[%s4 + $0x3c] sm:$0xf]
    %v50 = vld [vmem:[%s6] sm:$0xff]
    %v51 = vld [vmem:[%s6 + $0x8] sm:$0xff]
    %v52 = vld [vmem:[%s3] sm:$0xff]
    %v53 = vld [vmem:[%s3 + $0x8] sm:$0xff]
    %v54 = vld [vmem:[%s3 + $0x10] sm:$0xff]
    %v55 = vld [vmem:[%s3 + $0x18] sm:$0xff]
    %v56 = vld [vmem:[%s3 + $0x20] sm:$0xff]
    %v57 = vld [vmem:[%s3 + $0x28] sm:$0xff]
    %v58 = vld [vmem:[%s3 + $0x30] sm:$0xff]
    %v59 = vld [vmem:[%s3 + $0x38] sm:$0xff]
    %v60 = vld [vmem:[%s3 + $0x40] sm:$0xff]
    %v61 = vld [vmem:[%s3 + $0x48] sm:$0xff]
    %v62 = vld [vmem:[%s3 + $0x50] sm:$0xff]
    %v63 = vld [vmem:[%s3 + $0x58] sm:$0xff]
    %v64 = vld [vmem:[%s3 + $0x60] sm:$0xff]
    %v65 = vld [vmem:[%s3 + $0x68] sm:$0xff]
    %v66 = vld [vmem:[%s3 + $0x70] sm:$0xff]
    %v67 = vld [vmem:[%s3 + $0x78] sm:$0xff]
    %v68 = vld [vmem:[%s5] sm:$0xf]
    %v69 = vld [vmem:[%s5 + $0x4] sm:$0xf]
    %v70 = vld [vmem:[%s5 + $0x8] sm:$0xf]
    %v71 = vld [vmem:[%s5 + $0xc] sm:$0xf]
    %s72 = scalar_lea.vmem %s5, 16
    %v73 = vld [vmem:[%s72] sm:$0xf]
    %v74 = vld [vmem:[%s72 + $0x4] sm:$0xf]
    %v75 = vld [vmem:[%s72 + $0x8] sm:$0xf]
    %v76 = vld [vmem:[%s72 + $0xc] sm:$0xf]
    %s77 = scalar_lea.vmem %s5, 32
    %v78 = vld [vmem:[%s77] sm:$0xf]
    %v79 = vld [vmem:[%s77 + $0x4] sm:$0xf]
    %v80 = vld [vmem:[%s77 + $0x8] sm:$0xf]
    %v81 = vld [vmem:[%s77 + $0xc] sm:$0xf]
    %s82 = scalar_lea.vmem %s5, 48
    %v83 = vld [vmem:[%s82] sm:$0xf]
    %v84 = vld [vmem:[%s82 + $0x4] sm:$0xf]
    %v85 = vld [vmem:[%s82 + $0x8] sm:$0xf]
    %v86 = vld [vmem:[%s82 + $0xc] sm:$0xf]
    %v87 = vpack.c.bf16 %v29, %v28
    %v88 = vlaneseq
    %v89 = vshrl.u32 %v88, 7
    %v90 = vsub.s32 0, %v89
    %v91 = vrot.slane %v50, %v90
    %v96 = vunpack.c.l.b16 %v68
    %v97 = vunpack.c.l.b16 %v69
    %v98 = vunpack.c.l.b16 %v70
    %v99 = vunpack.c.l.b16 %v71
    %v100 = vpack.c.b16 %v97, %v96
    %v101 = vpack.c.b16 %v99, %v98
    %vm104 = vcmask 261120
    %v106 = vsel %vm104, %v87, 0
    %108 = vmatprep.subr.bf16.mxu0 0
    %109 = vmatpush1.bf16.msra.mxu0 0
    %110 = vmatprep.subr.bf16.mxu0 0
    %111 = vmatpush1.bf16.msra.mxu0 0
    %112 = vmatprep.subr.bf16.mxu0 0
    %113 = vmatpush1.bf16.msra.mxu0 0
    %114 = vmatprep.subr.bf16.mxu0 0
    %115 = vmatpush1.bf16.msra.mxu0 0
    %116 = vmatprep.subr.bf16.mxu0 0
    %117 = vmatpush1.bf16.msra.mxu0 0
    %118 = vmatprep.subr.bf16.mxu0 0
    %119 = vmatpush1.bf16.msra.mxu0 0
    %120 = vmatprep.subr.bf16.mxu0 0
    %121 = vmatpush1.bf16.msra.mxu0 %v101
    %122 = vmatprep.subr.bf16.mxu0 0
    %123 = vmatpush1.bf16.msra.mxu0 %v100
    %124 = vmatprep.subr.bf16.mxu0 0
    %125 = vmatpush2.bf16.msra.mxu0 0
    %126 = vmatprep.subr.bf16.mxu0 0
    %127 = vmatpush2.bf16.msra.mxu0 0
    %128 = vmatprep.subr.bf16.mxu0 0
    %129 = vmatpush2.bf16.msra.mxu0 0
    %130 = vmatprep.subr.bf16.mxu0 0
    %131 = vmatpush2.bf16.msra.mxu0 0
    %132 = vmatprep.subr.bf16.mxu0 0
    %133 = vmatpush2.bf16.msra.mxu0 0
    %134 = vmatprep.subr.bf16.mxu0 0
    %135 = vmatpush2.bf16.msra.mxu0 0
    %136 = vmatprep.subr.bf16.mxu0 0
    %137 = vmatpush2.bf16.msra.mxu0 0
    %138 = vmatprep.subr.bf16.mxu0 0
    %139 = vmatpush2.bf16.msra.mxu0 0
    %140 = vmatprep.mubr.bf16.mxu0 0
    %141 = vmatmul.mubr.bf16.gmra.mxu0 %v106
    %v142 = vpop.f32.mrf.mxu0
    %v143 = vadd.f32 %v91, %v142
    %v144 = vpop.f32.mrf.mxu0
    %v145 = vpop.f32.mrf.mxu0
    %v146 = vadd.f32 %v91, %v145
    %v147 = vpop.f32.mrf.mxu0
    %148 = vdwg.mxu0
    %v149 = vlaneseq
    %v150 = vshrl.u32 %v149, 7
    %v151 = vsub.s32 1, %v150
    %v152 = vrot.slane %v50, %v151
    %v157 = vunpack.c.l.b16 %v73
    %v158 = vunpack.c.l.b16 %v74
    %v159 = vunpack.c.l.b16 %v75
    %v160 = vunpack.c.l.b16 %v76
    %v161 = vpack.c.b16 %v158, %v157
    %v162 = vpack.c.b16 %v160, %v159
    %165 = vmatprep.subr.bf16.mxu0 0
    %166 = vmatpush1.bf16.msra.mxu0 0
    %167 = vmatprep.subr.bf16.mxu0 0
    %168 = vmatpush1.bf16.msra.mxu0 0
    %169 = vmatprep.subr.bf16.mxu0 0
    %170 = vmatpush1.bf16.msra.mxu0 0
    %171 = vmatprep.subr.bf16.mxu0 0
    %172 = vmatpush1.bf16.msra.mxu0 0
    %173 = vmatprep.subr.bf16.mxu0 0
    %174 = vmatpush1.bf16.msra.mxu0 0
    %175 = vmatprep.subr.bf16.mxu0 0
    %176 = vmatpush1.bf16.msra.mxu0 0
    %177 = vmatprep.subr.bf16.mxu0 0
    %178 = vmatpush1.bf16.msra.mxu0 %v162
    %179 = vmatprep.subr.bf16.mxu0 0
    %180 = vmatpush1.bf16.msra.mxu0 %v161
    %181 = vmatprep.subr.bf16.mxu0 0
    %182 = vmatpush2.bf16.msra.mxu0 0
    %183 = vmatprep.subr.bf16.mxu0 0
    %184 = vmatpush2.bf16.msra.mxu0 0
    %185 = vmatprep.subr.bf16.mxu0 0
    %186 = vmatpush2.bf16.msra.mxu0 0
    %187 = vmatprep.subr.bf16.mxu0 0
    %188 = vmatpush2.bf16.msra.mxu0 0
    %189 = vmatprep.subr.bf16.mxu0 0
    %190 = vmatpush2.bf16.msra.mxu0 0
    %191 = vmatprep.subr.bf16.mxu0 0
    %192 = vmatpush2.bf16.msra.mxu0 0
    %193 = vmatprep.subr.bf16.mxu0 0
    %194 = vmatpush2.bf16.msra.mxu0 0
    %195 = vmatprep.subr.bf16.mxu0 0
    %196 = vmatpush2.bf16.msra.mxu0 0
    %197 = vmatprep.mubr.bf16.mxu0 0
    %198 = vmatmul.mubr.bf16.gmra.mxu0 %v106
    %v199 = vpop.f32.mrf.mxu0
    %v200 = vadd.f32 %v152, %v199
    %v201 = vpop.f32.mrf.mxu0
    %v202 = vpop.f32.mrf.mxu0
    %v203 = vadd.f32 %v152, %v202
    %v204 = vpop.f32.mrf.mxu0
    %205 = vdwg.mxu0
    %v206 = vlaneseq
    %v207 = vshrl.u32 %v206, 7
    %v208 = vsub.s32 2, %v207
    %v209 = vrot.slane %v50, %v208
    %v214 = vunpack.c.l.b16 %v78
    %v215 = vunpack.c.l.b16 %v79
    %v216 = vunpack.c.l.b16 %v80
    %v217 = vunpack.c.l.b16 %v81
    %v218 = vpack.c.b16 %v215, %v214
    %v219 = vpack.c.b16 %v217, %v216
    %222 = vmatprep.subr.bf16.mxu0 0
    %223 = vmatpush1.bf16.msra.mxu0 0
    %224 = vmatprep.subr.bf16.mxu0 0
    %225 = vmatpush1.bf16.msra.mxu0 0
    %226 = vmatprep.subr.bf16.mxu0 0
    %227 = vmatpush1.bf16.msra.mxu0 0
    %228 = vmatprep.subr.bf16.mxu0 0
    %229 = vmatpush1.bf16.msra.mxu0 0
    %230 = vmatprep.subr.bf16.mxu0 0
    %231 = vmatpush1.bf16.msra.mxu0 0
    %232 = vmatprep.subr.bf16.mxu0 0
    %233 = vmatpush1.bf16.msra.mxu0 0
    %234 = vmatprep.subr.bf16.mxu0 0
    %235 = vmatpush1.bf16.msra.mxu0 %v219
    %236 = vmatprep.subr.bf16.mxu0 0
    %237 = vmatpush1.bf16.msra.mxu0 %v218
    %238 = vmatprep.subr.bf16.mxu0 0
    %239 = vmatpush2.bf16.msra.mxu0 0
    %240 = vmatprep.subr.bf16.mxu0 0
    %241 = vmatpush2.bf16.msra.mxu0 0
    %242 = vmatprep.subr.bf16.mxu0 0
    %243 = vmatpush2.bf16.msra.mxu0 0
    %244 = vmatprep.subr.bf16.mxu0 0
    %245 = vmatpush2.bf16.msra.mxu0 0
    %246 = vmatprep.subr.bf16.mxu0 0
    %247 = vmatpush2.bf16.msra.mxu0 0
    %248 = vmatprep.subr.bf16.mxu0 0
    %249 = vmatpush2.bf16.msra.mxu0 0
    %250 = vmatprep.subr.bf16.mxu0 0
    %251 = vmatpush2.bf16.msra.mxu0 0
    %252 = vmatprep.subr.bf16.mxu0 0
    %253 = vmatpush2.bf16.msra.mxu0 0
    %254 = vmatprep.mubr.bf16.mxu0 0
    %255 = vmatmul.mubr.bf16.gmra.mxu0 %v106
    %v256 = vpop.f32.mrf.mxu0
    %v257 = vadd.f32 %v209, %v256
    %v258 = vpop.f32.mrf.mxu0
    %v259 = vpop.f32.mrf.mxu0
    %v260 = vadd.f32 %v209, %v259
    %v261 = vpop.f32.mrf.mxu0
    %262 = vdwg.mxu0
    %v263 = vpack.c.bf16 %v146, %v143
    %v265 = vunpack.c.l.b16 %v263
    %v266 = vunpack.c.h.b16 %v263
    %v267 = vpack.c.b16 %v265, %v265
    %v268 = vpack.c.b16 %v266, %v266
    %v271 = vmul.bf16 %v34, %v267
    %v272 = vmul.bf16 %v35, %v268
    %v273 = vmul.bf16 %v36, %v267
    %v274 = vmul.bf16 %v37, %v268
    %v275 = vmul.bf16 %v38, %v267
    %v276 = vmul.bf16 %v39, %v268
    %v277 = vmul.bf16 %v40, %v267
    %v278 = vmul.bf16 %v41, %v268
    %v279 = vmul.bf16 %v42, %v267
    %v280 = vmul.bf16 %v43, %v268
    %v281 = vmul.bf16 %v44, %v267
    %v282 = vmul.bf16 %v45, %v268
    %v283 = vmul.bf16 %v46, %v267
    %v284 = vmul.bf16 %v47, %v268
    %v285 = vmul.bf16 %v48, %v267
    %v286 = vmul.bf16 %v49, %v268
    %v287 = vpack.c.bf16 %v203, %v200
    %v304 = vunpack.c.l.b16 %v271
    %v305 = vunpack.c.l.b16 %v272
    %v306 = vunpack.c.l.b16 %v273
    %v307 = vunpack.c.l.b16 %v274
    %v308 = vunpack.c.l.b16 %v275
    %v309 = vunpack.c.l.b16 %v276
    %v310 = vunpack.c.l.b16 %v277
    %v311 = vunpack.c.l.b16 %v278
    %v312 = vunpack.c.l.b16 %v279
    %v313 = vunpack.c.l.b16 %v280
    %v314 = vunpack.c.l.b16 %v281
    %v315 = vunpack.c.l.b16 %v282
    %v316 = vunpack.c.l.b16 %v283
    %v317 = vunpack.c.l.b16 %v284
    %v318 = vunpack.c.l.b16 %v285
    %v319 = vunpack.c.l.b16 %v286
    %v320 = vpack.c.b16 %v305, %v304
    %v321 = vpack.c.b16 %v307, %v306
    %v322 = vpack.c.b16 %v309, %v308
    %v323 = vpack.c.b16 %v311, %v310
    %v324 = vpack.c.b16 %v313, %v312
    %v325 = vpack.c.b16 %v315, %v314
    %v326 = vpack.c.b16 %v317, %v316
    %v327 = vpack.c.b16 %v319, %v318
    %v329 = vsel %vm104, %v320, 0
    %v332 = vsel %vm104, %v321, 0
    %v335 = vsel %vm104, %v322, 0
    %v338 = vsel %vm104, %v323, 0
    %v341 = vsel %vm104, %v324, 0
    %v344 = vsel %vm104, %v325, 0
    %v347 = vsel %vm104, %v326, 0
    %v350 = vsel %vm104, %v327, 0
    %v353 = vsel %vm104, %v287, 0
    %355 = vmatprep.subr.bf16.mxu0 0
    %356 = vmatpush1.bf16.xpose.msra.mxu0 0
    %357 = vmatprep.subr.bf16.mxu0 0
    %358 = vmatpush1.bf16.xpose.msra.mxu0 0
    %359 = vmatprep.subr.bf16.mxu0 0
    %360 = vmatpush1.bf16.xpose.msra.mxu0 0
    %361 = vmatprep.subr.bf16.mxu0 0
    %362 = vmatpush1.bf16.xpose.msra.mxu0 0
    %363 = vmatprep.subr.bf16.mxu0 0
    %364 = vmatpush1.bf16.xpose.msra.mxu0 0
    %365 = vmatprep.subr.bf16.mxu0 0
    %366 = vmatpush1.bf16.xpose.msra.mxu0 0
    %367 = vmatprep.subr.bf16.mxu0 0
    %368 = vmatpush1.bf16.xpose.msra.mxu0 0
    %369 = vmatprep.subr.bf16.mxu0 0
    %370 = vmatpush1.bf16.xpose.msra.mxu0 %v353
    %371 = vmatprep.subr.bf16.mxu0 0
    %372 = vmatpush2.bf16.xpose.msra.mxu0 0
    %373 = vmatprep.subr.bf16.mxu0 0
    %374 = vmatpush2.bf16.xpose.msra.mxu0 0
    %375 = vmatprep.subr.bf16.mxu0 0
    %376 = vmatpush2.bf16.xpose.msra.mxu0 0
    %377 = vmatprep.subr.bf16.mxu0 0
    %378 = vmatpush2.bf16.xpose.msra.mxu0 0
    %379 = vmatprep.subr.bf16.mxu0 0
    %380 = vmatpush2.bf16.xpose.msra.mxu0 0
    %381 = vmatprep.subr.bf16.mxu0 0
    %382 = vmatpush2.bf16.xpose.msra.mxu0 0
    %383 = vmatprep.subr.bf16.mxu0 0
    %384 = vmatpush2.bf16.xpose.msra.mxu0 0
    %385 = vmatprep.subr.bf16.mxu0 0
    %386 = vmatpush2.bf16.xpose.msra.mxu0 0
    %387 = vmatprep.mubr.bf16.mxu0 0
    %388 = vmatmul.mubr.bf16.gmra.mxu0 %v329
    %v389 = vpop.f32.mrf.mxu0
    %v390 = vadd.f32 %v52, %v389
    %v391 = vpop.f32.mrf.mxu0
    %v392 = vpop.f32.mrf.mxu0
    %v393 = vadd.f32 %v53, %v392
    %v394 = vpop.f32.mrf.mxu0
    %395 = vmatprep.mubr.bf16.mxu0 0
    %396 = vmatmul.mubr.bf16.gmra.mxu0 %v332
    %v397 = vpop.f32.mrf.mxu0
    %v398 = vadd.f32 %v54, %v397
    %v399 = vpop.f32.mrf.mxu0
    %v400 = vpop.f32.mrf.mxu0
    %v401 = vadd.f32 %v55, %v400
    %v402 = vpop.f32.mrf.mxu0
    %403 = vmatprep.mubr.bf16.mxu0 0
    %404 = vmatmul.mubr.bf16.gmra.mxu0 %v335
    %v405 = vpop.f32.mrf.mxu0
    %v406 = vadd.f32 %v56, %v405
    %v407 = vpop.f32.mrf.mxu0
    %v408 = vpop.f32.mrf.mxu0
    %v409 = vadd.f32 %v57, %v408
    %v410 = vpop.f32.mrf.mxu0
    %411 = vmatprep.mubr.bf16.mxu0 0
    %412 = vmatmul.mubr.bf16.gmra.mxu0 %v338
    %v413 = vpop.f32.mrf.mxu0
    %v414 = vadd.f32 %v58, %v413
    %v415 = vpop.f32.mrf.mxu0
    %v416 = vpop.f32.mrf.mxu0
    %v417 = vadd.f32 %v59, %v416
    %v418 = vpop.f32.mrf.mxu0
    %419 = vmatprep.mubr.bf16.mxu0 0
    %420 = vmatmul.mubr.bf16.gmra.mxu0 %v341
    %v421 = vpop.f32.mrf.mxu0
    %v422 = vadd.f32 %v60, %v421
    %v423 = vpop.f32.mrf.mxu0
    %v424 = vpop.f32.mrf.mxu0
    %v425 = vadd.f32 %v61, %v424
    %v426 = vpop.f32.mrf.mxu0
    %427 = vmatprep.mubr.bf16.mxu0 0
    %428 = vmatmul.mubr.bf16.gmra.mxu0 %v344
    %v429 = vpop.f32.mrf.mxu0
    %v430 = vadd.f32 %v62, %v429
    %v431 = vpop.f32.mrf.mxu0
    %v432 = vpop.f32.mrf.mxu0
    %v433 = vadd.f32 %v63, %v432
    %v434 = vpop.f32.mrf.mxu0
    %435 = vmatprep.mubr.bf16.mxu0 0
    %436 = vmatmul.mubr.bf16.gmra.mxu0 %v347
    %v437 = vpop.f32.mrf.mxu0
    %v438 = vadd.f32 %v64, %v437
    %v439 = vpop.f32.mrf.mxu0
    %v440 = vpop.f32.mrf.mxu0
    %v441 = vadd.f32 %v65, %v440
    %v442 = vpop.f32.mrf.mxu0
    %443 = vmatprep.mubr.bf16.mxu0 0
    %444 = vmatmul.mubr.bf16.gmra.mxu0 %v350
    %v445 = vpop.f32.mrf.mxu0
    %v446 = vadd.f32 %v66, %v445
    %v447 = vpop.f32.mrf.mxu0
    %v448 = vpop.f32.mrf.mxu0
    %v449 = vadd.f32 %v67, %v448
    %v450 = vpop.f32.mrf.mxu0
    %451 = vdwg.mxu0
    %vm452 = vcmask 130048
    %v453 = vsel %vm452, %v390, -inf
    %454 = vmax.xlane.f32.xlu0 %v453
    %v455 = vpop.xlane.xlu0 %454
    %v456 = vsel %vm452, %v393, -inf
    %457 = vmax.xlane.f32.xlu0 %v456
    %v458 = vpop.xlane.xlu0 %457
    %v459 = vsel %vm452, %v398, -inf
    %460 = vmax.xlane.f32.xlu0 %v459
    %v461 = vpop.xlane.xlu0 %460
    %v462 = vsel %vm452, %v401, -inf
    %463 = vmax.xlane.f32.xlu0 %v462
    %v464 = vpop.xlane.xlu0 %463
    %v465 = vsel %vm452, %v406, -inf
    %466 = vmax.xlane.f32.xlu0 %v465
    %v467 = vpop.xlane.xlu0 %466
    %v468 = vsel %vm452, %v409, -inf
    %469 = vmax.xlane.f32.xlu0 %v468
    %v470 = vpop.xlane.xlu0 %469
    %v471 = vsel %vm452, %v414, -inf
    %472 = vmax.xlane.f32.xlu0 %v471
    %v473 = vpop.xlane.xlu0 %472
    %v474 = vsel %vm452, %v417, -inf
    %475 = vmax.xlane.f32.xlu0 %v474
    %v476 = vpop.xlane.xlu0 %475
    %v477 = vsel %vm452, %v422, -inf
    %478 = vmax.xlane.f32.xlu0 %v477
    %v479 = vpop.xlane.xlu0 %478
    %v480 = vsel %vm452, %v425, -inf
    %481 = vmax.xlane.f32.xlu0 %v480
    %v482 = vpop.xlane.xlu0 %481
    %v483 = vsel %vm452, %v430, -inf
    %484 = vmax.xlane.f32.xlu0 %v483
    %v485 = vpop.xlane.xlu0 %484
    %v486 = vsel %vm452, %v433, -inf
    %487 = vmax.xlane.f32.xlu0 %v486
    %v488 = vpop.xlane.xlu0 %487
    %v489 = vsel %vm452, %v438, -inf
    %490 = vmax.xlane.f32.xlu0 %v489
    %v491 = vpop.xlane.xlu0 %490
    %v492 = vsel %vm452, %v441, -inf
    %493 = vmax.xlane.f32.xlu0 %v492
    %v494 = vpop.xlane.xlu0 %493
    %v495 = vsel %vm452, %v446, -inf
    %496 = vmax.xlane.f32.xlu0 %v495
    %v497 = vpop.xlane.xlu0 %496
    %v498 = vsel %vm452, %v449, -inf
    %499 = vmax.xlane.f32.xlu0 %v498
    %v500 = vpop.xlane.xlu0 %499
    %v501 = vsub.f32 %v390, %v455
    %v502 = vsub.f32 %v393, %v458
    %v503 = vsub.f32 %v398, %v461
    %v504 = vsub.f32 %v401, %v464
    %v505 = vsub.f32 %v406, %v467
    %v506 = vsub.f32 %v409, %v470
    %v507 = vsub.f32 %v414, %v473
    %v508 = vsub.f32 %v417, %v476
    %v509 = vsub.f32 %v422, %v479
    %v510 = vsub.f32 %v425, %v482
    %v511 = vsub.f32 %v430, %v485
    %v512 = vsub.f32 %v433, %v488
    %v513 = vsub.f32 %v438, %v491
    %v514 = vsub.f32 %v441, %v494
    %v515 = vsub.f32 %v446, %v497
    %v516 = vsub.f32 %v449, %v500
    %v517 = vmul.f32 %v501, 1.442695
    %v518 = vpow.pop %v517
    %v519 = vmul.f32 %v502, 1.442695
    %v520 = vpow.pop %v519
    %v521 = vmul.f32 %v503, 1.442695
    %v522 = vpow.pop %v521
    %v523 = vmul.f32 %v504, 1.442695
    %v524 = vpow.pop %v523
    %v525 = vmul.f32 %v505, 1.442695
    %v526 = vpow.pop %v525
    %v527 = vmul.f32 %v506, 1.442695
    %v528 = vpow.pop %v527
    %v529 = vmul.f32 %v507, 1.442695
    %v530 = vpow.pop %v529
    %v531 = vmul.f32 %v508, 1.442695
    %v532 = vpow.pop %v531
    %v533 = vmul.f32 %v509, 1.442695
    %v534 = vpow.pop %v533
    %v535 = vmul.f32 %v510, 1.442695
    %v536 = vpow.pop %v535
    %v537 = vmul.f32 %v511, 1.442695
    %v538 = vpow.pop %v537
    %v539 = vmul.f32 %v512, 1.442695
    %v540 = vpow.pop %v539
    %v541 = vmul.f32 %v513, 1.442695
    %v542 = vpow.pop %v541
    %v543 = vmul.f32 %v514, 1.442695
    %v544 = vpow.pop %v543
    %v545 = vmul.f32 %v515, 1.442695
    %v546 = vpow.pop %v545
    %v547 = vmul.f32 %v516, 1.442695
    %v548 = vpow.pop %v547
    %v549 = vsel %vm452, %v518, 0.0
    %550 = vadd.xlane.f32.xlu0 %v549
    %v551 = vpop.xlane.xlu0 %550
    %v552 = vsel %vm452, %v520, 0.0
    %553 = vadd.xlane.f32.xlu0 %v552
    %v554 = vpop.xlane.xlu0 %553
    %v555 = vsel %vm452, %v522, 0.0
    %556 = vadd.xlane.f32.xlu0 %v555
    %v557 = vpop.xlane.xlu0 %556
    %v558 = vsel %vm452, %v524, 0.0
    %559 = vadd.xlane.f32.xlu0 %v558
    %v560 = vpop.xlane.xlu0 %559
    %v561 = vsel %vm452, %v526, 0.0
    %562 = vadd.xlane.f32.xlu0 %v561
    %v563 = vpop.xlane.xlu0 %562
    %v564 = vsel %vm452, %v528, 0.0
    %565 = vadd.xlane.f32.xlu0 %v564
    %v566 = vpop.xlane.xlu0 %565
    %v567 = vsel %vm452, %v530, 0.0
    %568 = vadd.xlane.f32.xlu0 %v567
    %v569 = vpop.xlane.xlu0 %568
    %v570 = vsel %vm452, %v532, 0.0
    %571 = vadd.xlane.f32.xlu0 %v570
    %v572 = vpop.xlane.xlu0 %571
    %v573 = vsel %vm452, %v534, 0.0
    %574 = vadd.xlane.f32.xlu0 %v573
    %v575 = vpop.xlane.xlu0 %574
    %v576 = vsel %vm452, %v536, 0.0
    %577 = vadd.xlane.f32.xlu0 %v576
    %v578 = vpop.xlane.xlu0 %577
    %v579 = vsel %vm452, %v538, 0.0
    %580 = vadd.xlane.f32.xlu0 %v579
    %v581 = vpop.xlane.xlu0 %580
    %v582 = vsel %vm452, %v540, 0.0
    %583 = vadd.xlane.f32.xlu0 %v582
    %v584 = vpop.xlane.xlu0 %583
    %v585 = vsel %vm452, %v542, 0.0
    %586 = vadd.xlane.f32.xlu0 %v585
    %v587 = vpop.xlane.xlu0 %586
    %v588 = vsel %vm452, %v544, 0.0
    %589 = vadd.xlane.f32.xlu0 %v588
    %v590 = vpop.xlane.xlu0 %589
    %v591 = vsel %vm452, %v546, 0.0
    %592 = vadd.xlane.f32.xlu0 %v591
    %v593 = vpop.xlane.xlu0 %592
    %v594 = vsel %vm452, %v548, 0.0
    %595 = vadd.xlane.f32.xlu0 %v594
    %v596 = vpop.xlane.xlu0 %595
    %v597 = vrcp.pop %v551
    %v598 = vrcp.pop %v554
    %v599 = vrcp.pop %v557
    %v600 = vrcp.pop %v560
    %v601 = vrcp.pop %v563
    %v602 = vrcp.pop %v566
    %v603 = vrcp.pop %v569
    %v604 = vrcp.pop %v572
    %v605 = vrcp.pop %v575
    %v606 = vrcp.pop %v578
    %v607 = vrcp.pop %v581
    %v608 = vrcp.pop %v584
    %v609 = vrcp.pop %v587
    %v610 = vrcp.pop %v590
    %v611 = vrcp.pop %v593
    %v612 = vrcp.pop %v596
    %v613 = vmul.f32 %v518, %v597
    %v614 = vmul.f32 %v520, %v598
    %v615 = vmul.f32 %v522, %v599
    %v616 = vmul.f32 %v524, %v600
    %v617 = vmul.f32 %v526, %v601
    %v618 = vmul.f32 %v528, %v602
    %v619 = vmul.f32 %v530, %v603
    %v620 = vmul.f32 %v532, %v604
    %v621 = vmul.f32 %v534, %v605
    %v622 = vmul.f32 %v536, %v606
    %v623 = vmul.f32 %v538, %v607
    %v624 = vmul.f32 %v540, %v608
    %v625 = vmul.f32 %v542, %v609
    %v626 = vmul.f32 %v544, %v610
    %v627 = vmul.f32 %v546, %v611
    %v628 = vmul.f32 %v548, %v612
    %v629 = vpack.c.bf16 %v614, %v613
    %v630 = vpack.c.bf16 %v616, %v615
    %v631 = vpack.c.bf16 %v618, %v617
    %v632 = vpack.c.bf16 %v620, %v619
    %v633 = vpack.c.bf16 %v622, %v621
    %v634 = vpack.c.bf16 %v624, %v623
    %v635 = vpack.c.bf16 %v626, %v625
    %v636 = vpack.c.bf16 %v628, %v627
    %v637 = vpack.c.bf16 %v260, %v257
    %v639 = vsel %vm452, %v629, 0
    %v642 = vsel %vm452, %v630, 0
    %v645 = vsel %vm452, %v631, 0
    %v648 = vsel %vm452, %v632, 0
    %v651 = vsel %vm452, %v633, 0
    %v654 = vsel %vm452, %v634, 0
    %v657 = vsel %vm452, %v635, 0
    %v660 = vsel %vm452, %v636, 0
    %662 = vmatprep.subr.bf16.mxu0 0
    %663 = vmatpush1.bf16.msra.mxu0 0
    %664 = vmatprep.subr.bf16.mxu0 0
    %665 = vmatpush1.bf16.msra.mxu0 0
    %666 = vmatprep.subr.bf16.mxu0 0
    %667 = vmatpush1.bf16.msra.mxu0 0
    %668 = vmatprep.subr.bf16.mxu0 0
    %669 = vmatpush1.bf16.msra.mxu0 0
    %670 = vmatprep.subr.bf16.mxu0 0
    %671 = vmatpush1.bf16.msra.mxu0 0
    %672 = vmatprep.subr.bf16.mxu0 0
    %673 = vmatpush1.bf16.msra.mxu0 0
    %674 = vmatprep.subr.bf16.mxu0 0
    %675 = vmatpush1.bf16.msra.mxu0 0
    %676 = vmatprep.subr.bf16.mxu0 0
    %677 = vmatpush1.bf16.msra.mxu0 %v637
    %678 = vmatprep.subr.bf16.mxu0 0
    %679 = vmatpush2.bf16.msra.mxu0 0
    %680 = vmatprep.subr.bf16.mxu0 0
    %681 = vmatpush2.bf16.msra.mxu0 0
    %682 = vmatprep.subr.bf16.mxu0 0
    %683 = vmatpush2.bf16.msra.mxu0 0
    %684 = vmatprep.subr.bf16.mxu0 0
    %685 = vmatpush2.bf16.msra.mxu0 0
    %686 = vmatprep.subr.bf16.mxu0 0
    %687 = vmatpush2.bf16.msra.mxu0 0
    %688 = vmatprep.subr.bf16.mxu0 0
    %689 = vmatpush2.bf16.msra.mxu0 0
    %690 = vmatprep.subr.bf16.mxu0 0
    %691 = vmatpush2.bf16.msra.mxu0 0
    %692 = vmatprep.subr.bf16.mxu0 0
    %693 = vmatpush2.bf16.msra.mxu0 0
    %694 = vmatprep.mubr.bf16.mxu0 0
    %695 = vmatmul.mubr.bf16.gmra.mxu0 %v639
    %v696 = vpop.f32.mrf.mxu0
    %v697 = vadd.f32 0.0, %v696
    %v698 = vpop.f32.mrf.mxu0
    %v699 = vpop.f32.mrf.mxu0
    %v700 = vadd.f32 0.0, %v699
    %v701 = vpop.f32.mrf.mxu0
    %702 = vmatprep.mubr.bf16.mxu0 0
    %703 = vmatmul.mubr.bf16.gmra.mxu0 %v642
    %v704 = vpop.f32.mrf.mxu0
    %v705 = vadd.f32 0.0, %v704
    %v706 = vpop.f32.mrf.mxu0
    %v707 = vpop.f32.mrf.mxu0
    %v708 = vadd.f32 0.0, %v707
    %v709 = vpop.f32.mrf.mxu0
    %710 = vmatprep.mubr.bf16.mxu0 0
    %711 = vmatmul.mubr.bf16.gmra.mxu0 %v645
    %v712 = vpop.f32.mrf.mxu0
    %v713 = vadd.f32 0.0, %v712
    %v714 = vpop.f32.mrf.mxu0
    %v715 = vpop.f32.mrf.mxu0
    %v716 = vadd.f32 0.0, %v715
    %v717 = vpop.f32.mrf.mxu0
    %718 = vmatprep.mubr.bf16.mxu0 0
    %719 = vmatmul.mubr.bf16.gmra.mxu0 %v648
    %v720 = vpop.f32.mrf.mxu0
    %v721 = vadd.f32 0.0, %v720
    %v722 = vpop.f32.mrf.mxu0
    %v723 = vpop.f32.mrf.mxu0
    %v724 = vadd.f32 0.0, %v723
    %v725 = vpop.f32.mrf.mxu0
    %726 = vmatprep.mubr.bf16.mxu0 0
    %727 = vmatmul.mubr.bf16.gmra.mxu0 %v651
    %v728 = vpop.f32.mrf.mxu0
    %v729 = vadd.f32 0.0, %v728
    %v730 = vpop.f32.mrf.mxu0
    %v731 = vpop.f32.mrf.mxu0
    %v732 = vadd.f32 0.0, %v731
    %v733 = vpop.f32.mrf.mxu0
    %734 = vmatprep.mubr.bf16.mxu0 0
    %735 = vmatmul.mubr.bf16.gmra.mxu0 %v654
    %v736 = vpop.f32.mrf.mxu0
    %v737 = vadd.f32 0.0, %v736
    %v738 = vpop.f32.mrf.mxu0
    %v739 = vpop.f32.mrf.mxu0
    %v740 = vadd.f32 0.0, %v739
    %v741 = vpop.f32.mrf.mxu0
    %742 = vmatprep.mubr.bf16.mxu0 0
    %743 = vmatmul.mubr.bf16.gmra.mxu0 %v657
    %v744 = vpop.f32.mrf.mxu0
    %v745 = vadd.f32 0.0, %v744
    %v746 = vpop.f32.mrf.mxu0
    %v747 = vpop.f32.mrf.mxu0
    %v748 = vadd.f32 0.0, %v747
    %v749 = vpop.f32.mrf.mxu0
    %750 = vmatprep.mubr.bf16.mxu0 0
    %751 = vmatmul.mubr.bf16.gmra.mxu0 %v660
    %v752 = vpop.f32.mrf.mxu0
    %v753 = vadd.f32 0.0, %v752
    %v754 = vpop.f32.mrf.mxu0
    %v755 = vpop.f32.mrf.mxu0
    %v756 = vadd.f32 0.0, %v755
    %v757 = vpop.f32.mrf.mxu0
    %758 = vdwg.mxu0
    %v759 = vunpack.c.l.bf16 %v34
    %v760 = vunpack.c.l.bf16 %v35
    %v761 = vunpack.c.l.bf16 %v36
    %v762 = vunpack.c.l.bf16 %v37
    %v763 = vunpack.c.l.bf16 %v38
    %v764 = vunpack.c.l.bf16 %v39
    %v765 = vunpack.c.l.bf16 %v40
    %v766 = vunpack.c.l.bf16 %v41
    %v767 = vunpack.c.l.bf16 %v42
    %v768 = vunpack.c.l.bf16 %v43
    %v769 = vunpack.c.l.bf16 %v44
    %v770 = vunpack.c.l.bf16 %v45
    %v771 = vunpack.c.l.bf16 %v46
    %v772 = vunpack.c.l.bf16 %v47
    %v773 = vunpack.c.l.bf16 %v48
    %v774 = vunpack.c.l.bf16 %v49
    %v775 = vmul.f32 %v697, %v759
    %v776 = vmul.f32 %v700, %v760
    %v777 = vmul.f32 %v705, %v761
    %v778 = vmul.f32 %v708, %v762
    %v779 = vmul.f32 %v713, %v763
    %v780 = vmul.f32 %v716, %v764
    %v781 = vmul.f32 %v721, %v765
    %v782 = vmul.f32 %v724, %v766
    %v783 = vmul.f32 %v729, %v767
    %v784 = vmul.f32 %v732, %v768
    %v785 = vmul.f32 %v737, %v769
    %v786 = vmul.f32 %v740, %v770
    %v787 = vmul.f32 %v745, %v771
    %v788 = vmul.f32 %v748, %v772
    %v789 = vmul.f32 %v753, %v773
    %v790 = vmul.f32 %v756, %v774
    %v791 = vsel %vm104, %v775, 0.0
    %v792 = vsel %vm104, %v777, 0.0
    %v793 = vadd.f32 %v791, %v792
    %v794 = vsel %vm104, %v779, 0.0
    %v795 = vadd.f32 %v793, %v794
    %v796 = vsel %vm104, %v781, 0.0
    %v797 = vadd.f32 %v795, %v796
    %v798 = vsel %vm104, %v783, 0.0
    %v799 = vadd.f32 %v797, %v798
    %v800 = vsel %vm104, %v785, 0.0
    %v801 = vadd.f32 %v799, %v800
    %v802 = vsel %vm104, %v787, 0.0
    %v803 = vadd.f32 %v801, %v802
    %v804 = vsel %vm104, %v789, 0.0
    %v805 = vadd.f32 %v803, %v804
    %v806 = vsel %vm104, %v776, 0.0
    %v807 = vsel %vm104, %v778, 0.0
    %v808 = vadd.f32 %v806, %v807
    %v809 = vsel %vm104, %v780, 0.0
    %v810 = vadd.f32 %v808, %v809
    %v811 = vsel %vm104, %v782, 0.0
    %v812 = vadd.f32 %v810, %v811
    %v813 = vsel %vm104, %v784, 0.0
    %v814 = vadd.f32 %v812, %v813
    %v815 = vsel %vm104, %v786, 0.0
    %v816 = vadd.f32 %v814, %v815
    %v817 = vsel %vm104, %v788, 0.0
    %v818 = vadd.f32 %v816, %v817
    %v819 = vsel %vm104, %v790, 0.0
    %v820 = vadd.f32 %v818, %v819
    %v821 = vpack.c.bf16 %v820, %v805
    %v822 = vlaneseq
    %v823 = vshrl.u32 %v822, 7
    %v824 = vsub.s32 3, %v823
    %v825 = vrot.slane %v50, %v824
    %v830 = vunpack.c.l.b16 %v83
    %v831 = vunpack.c.l.b16 %v84
    %v832 = vunpack.c.l.b16 %v85
    %v833 = vunpack.c.l.b16 %v86
    %v834 = vpack.c.b16 %v831, %v830
    %v835 = vpack.c.b16 %v833, %v832
    %v839 = vsel %vm104, %v821, 0
    %841 = vmatprep.subr.bf16.mxu0 0
    %842 = vmatpush1.bf16.msra.mxu0 0
    %843 = vmatprep.subr.bf16.mxu0 0
    %844 = vmatpush1.bf16.msra.mxu0 0
    %845 = vmatprep.subr.bf16.mxu0 0
    %846 = vmatpush1.bf16.msra.mxu0 0
    %847 = vmatprep.subr.bf16.mxu0 0
    %848 = vmatpush1.bf16.msra.mxu0 0
    %849 = vmatprep.subr.bf16.mxu0 0
    %850 = vmatpush1.bf16.msra.mxu0 0
    %851 = vmatprep.subr.bf16.mxu0 0
    %852 = vmatpush1.bf16.msra.mxu0 0
    %853 = vmatprep.subr.bf16.mxu0 0
    %854 = vmatpush1.bf16.msra.mxu0 %v835
    %855 = vmatprep.subr.bf16.mxu0 0
    %856 = vmatpush1.bf16.msra.mxu0 %v834
    %857 = vmatprep.subr.bf16.mxu0 0
    %858 = vmatpush2.bf16.msra.mxu0 0
    %859 = vmatprep.subr.bf16.mxu0 0
    %860 = vmatpush2.bf16.msra.mxu0 0
    %861 = vmatprep.subr.bf16.mxu0 0
    %862 = vmatpush2.bf16.msra.mxu0 0
    %863 = vmatprep.subr.bf16.mxu0 0
    %864 = vmatpush2.bf16.msra.mxu0 0
    %865 = vmatprep.subr.bf16.mxu0 0
    %866 = vmatpush2.bf16.msra.mxu0 0
    %867 = vmatprep.subr.bf16.mxu0 0
    %868 = vmatpush2.bf16.msra.mxu0 0
    %869 = vmatprep.subr.bf16.mxu0 0
    %870 = vmatpush2.bf16.msra.mxu0 0
    %871 = vmatprep.subr.bf16.mxu0 0
    %872 = vmatpush2.bf16.msra.mxu0 0
    %873 = vmatprep.mubr.bf16.mxu0 0
    %874 = vmatmul.mubr.bf16.gmra.mxu0 %v839
    %v875 = vpop.f32.mrf.mxu0
    %v876 = vadd.f32 %v825, %v875
    %v877 = vpop.f32.mrf.mxu0
    %v878 = vpop.f32.mrf.mxu0
    %v879 = vadd.f32 %v825, %v878
    %v880 = vpop.f32.mrf.mxu0
    %881 = vdwg.mxu0
    %v882 = vadd.f32 %v876, %v28
    %v883 = vadd.f32 %v879, %v29
    %v884 = vsel %vm104, %v882, 0.0
    %885 = vadd.xlane.f32.xlu0 %v884
    %v886 = vpop.xlane.xlu0 %885
    %v887 = vsel %vm104, %v883, 0.0
    %888 = vadd.xlane.f32.xlu0 %v887
    %v889 = vpop.xlane.xlu0 %888
    %v890 = vrcp.pop 32.0
    %v891 = vmul.f32 %v886, %v890
    %v892 = vmul.f32 %v889, %v890
    %v893 = vsub.f32 %v882, %v891
    %v894 = vsub.f32 %v883, %v892
    %v895 = vmul.f32 %v893, %v893
    %v896 = vmul.f32 %v894, %v894
    %v897 = vsel %vm104, %v895, 0.0
    %898 = vadd.xlane.f32.xlu0 %v897
    %v899 = vpop.xlane.xlu0 %898
    %v900 = vsel %vm104, %v896, 0.0
    %901 = vadd.xlane.f32.xlu0 %v900
    %v902 = vpop.xlane.xlu0 %901
    %v903 = vmul.f32 %v899, %v890
    %v904 = vmul.f32 %v902, %v890
    %v905 = vadd.f32 %v903, 1e-05
    %v906 = vadd.f32 %v904, 1e-05
    %v907 = vrsqrt.pop %v905
    %v908 = vrsqrt.pop %v906
    %v909 = vmul.f32 %v893, %v907
    %v910 = vmul.f32 %v894, %v908
    %v911 = vlaneseq
    %v912 = vshrl.u32 %v911, 7
    %v913 = vsub.s32 4, %v912
    %v914 = vrot.slane %v50, %v913
    %v915 = vmul.f32 %v909, %v914
    %v916 = vmul.f32 %v910, %v914
    %v917 = vlaneseq
    %v918 = vshrl.u32 %v917, 7
    %v919 = vsub.s32 5, %v918
    %v920 = vrot.slane %v50, %v919
    %v921 = vadd.f32 %v915, %v920
    %v922 = vadd.f32 %v916, %v920
    %s923 = scalar_lea.vmem %s3, 128
    %v924 = vld [vmem:[%s923] sm:$0xff]
    %v925 = vld [vmem:[%s923 + $0x8] sm:$0xff]
    %v926 = vld [vmem:[%s923 + $0x10] sm:$0xff]
    %v927 = vld [vmem:[%s923 + $0x18] sm:$0xff]
    %v928 = vld [vmem:[%s923 + $0x20] sm:$0xff]
    %v929 = vld [vmem:[%s923 + $0x28] sm:$0xff]
    %v930 = vld [vmem:[%s923 + $0x30] sm:$0xff]
    %v931 = vld [vmem:[%s923 + $0x38] sm:$0xff]
    %v932 = vld [vmem:[%s923 + $0x40] sm:$0xff]
    %v933 = vld [vmem:[%s923 + $0x48] sm:$0xff]
    %v934 = vld [vmem:[%s923 + $0x50] sm:$0xff]
    %v935 = vld [vmem:[%s923 + $0x58] sm:$0xff]
    %v936 = vld [vmem:[%s923 + $0x60] sm:$0xff]
    %v937 = vld [vmem:[%s923 + $0x68] sm:$0xff]
    %v938 = vld [vmem:[%s923 + $0x70] sm:$0xff]
    %v939 = vld [vmem:[%s923 + $0x78] sm:$0xff]
    %s940 = scalar_lea.vmem %s5, 64
    %v941 = vld [vmem:[%s940] sm:$0xf]
    %v942 = vld [vmem:[%s940 + $0x4] sm:$0xf]
    %v943 = vld [vmem:[%s940 + $0x8] sm:$0xf]
    %v944 = vld [vmem:[%s940 + $0xc] sm:$0xf]
    %s945 = scalar_lea.vmem %s5, 80
    %v946 = vld [vmem:[%s945] sm:$0xf]
    %v947 = vld [vmem:[%s945 + $0x4] sm:$0xf]
    %v948 = vld [vmem:[%s945 + $0x8] sm:$0xf]
    %v949 = vld [vmem:[%s945 + $0xc] sm:$0xf]
    %s950 = scalar_lea.vmem %s5, 96
    %v951 = vld [vmem:[%s950] sm:$0xf]
    %v952 = vld [vmem:[%s950 + $0x4] sm:$0xf]
    %v953 = vld [vmem:[%s950 + $0x8] sm:$0xf]
    %v954 = vld [vmem:[%s950 + $0xc] sm:$0xf]
    %s955 = scalar_lea.vmem %s5, 112
    %v956 = vld [vmem:[%s955] sm:$0xf]
    %v957 = vld [vmem:[%s955 + $0x4] sm:$0xf]
    %v958 = vld [vmem:[%s955 + $0x8] sm:$0xf]
    %v959 = vld [vmem:[%s955 + $0xc] sm:$0xf]
    %v960 = vpack.c.bf16 %v922, %v921
    %v961 = vlaneseq
    %v962 = vshrl.u32 %v961, 7
    %v963 = vsub.s32 6, %v962
    %v964 = vrot.slane %v50, %v963
    %v969 = vunpack.c.l.b16 %v941
    %v970 = vunpack.c.l.b16 %v942
    %v971 = vunpack.c.l.b16 %v943
    %v972 = vunpack.c.l.b16 %v944
    %v973 = vpack.c.b16 %v970, %v969
    %v974 = vpack.c.b16 %v972, %v971
    %v978 = vsel %vm104, %v960, 0
    %980 = vmatprep.subr.bf16.mxu0 0
    %981 = vmatpush1.bf16.msra.mxu0 0
    %982 = vmatprep.subr.bf16.mxu0 0
    %983 = vmatpush1.bf16.msra.mxu0 0
    %984 = vmatprep.subr.bf16.mxu0 0
    %985 = vmatpush1.bf16.msra.mxu0 0
    %986 = vmatprep.subr.bf16.mxu0 0
    %987 = vmatpush1.bf16.msra.mxu0 0
    %988 = vmatprep.subr.bf16.mxu0 0
    %989 = vmatpush1.bf16.msra.mxu0 0
    %990 = vmatprep.subr.bf16.mxu0 0
    %991 = vmatpush1.bf16.msra.mxu0 0
    %992 = vmatprep.subr.bf16.mxu0 0
    %993 = vmatpush1.bf16.msra.mxu0 %v974
    %994 = vmatprep.subr.bf16.mxu0 0
    %995 = vmatpush1.bf16.msra.mxu0 %v973
    %996 = vmatprep.subr.bf16.mxu0 0
    %997 = vmatpush2.bf16.msra.mxu0 0
    %998 = vmatprep.subr.bf16.mxu0 0
    %999 = vmatpush2.bf16.msra.mxu0 0
    %1000 = vmatprep.subr.bf16.mxu0 0
    %1001 = vmatpush2.bf16.msra.mxu0 0
    %1002 = vmatprep.subr.bf16.mxu0 0
    %1003 = vmatpush2.bf16.msra.mxu0 0
    %1004 = vmatprep.subr.bf16.mxu0 0
    %1005 = vmatpush2.bf16.msra.mxu0 0
    %1006 = vmatprep.subr.bf16.mxu0 0
    %1007 = vmatpush2.bf16.msra.mxu0 0
    %1008 = vmatprep.subr.bf16.mxu0 0
    %1009 = vmatpush2.bf16.msra.mxu0 0
    %1010 = vmatprep.subr.bf16.mxu0 0
    %1011 = vmatpush2.bf16.msra.mxu0 0
    %1012 = vmatprep.mubr.bf16.mxu0 0
    %1013 = vmatmul.mubr.bf16.gmra.mxu0 %v978
    %v1014 = vpop.f32.mrf.mxu0
    %v1015 = vadd.f32 %v964, %v1014
    %v1016 = vpop.f32.mrf.mxu0
    %v1017 = vpop.f32.mrf.mxu0
    %v1018 = vadd.f32 %v964, %v1017
    %v1019 = vpop.f32.mrf.mxu0
    %1020 = vdwg.mxu0
    %v1021 = vpack.c.bf16 %v33, %v32
    %v1022 = vlaneseq
    %v1023 = vshrl.u32 %v1022, 7
    %v1024 = vsub.s32 7, %v1023
    %v1025 = vrot.slane %v50, %v1024
    %v1030 = vunpack.c.l.b16 %v946
    %v1031 = vunpack.c.l.b16 %v947
    %v1032 = vunpack.c.l.b16 %v948
    %v1033 = vunpack.c.l.b16 %v949
    %v1034 = vpack.c.b16 %v1031, %v1030
    %v1035 = vpack.c.b16 %v1033, %v1032
    %v1039 = vsel %vm104, %v1021, 0
    %1041 = vmatprep.subr.bf16.mxu0 0
    %1042 = vmatpush1.bf16.msra.mxu0 0
    %1043 = vmatprep.subr.bf16.mxu0 0
    %1044 = vmatpush1.bf16.msra.mxu0 0
    %1045 = vmatprep.subr.bf16.mxu0 0
    %1046 = vmatpush1.bf16.msra.mxu0 0
    %1047 = vmatprep.subr.bf16.mxu0 0
    %1048 = vmatpush1.bf16.msra.mxu0 0
    %1049 = vmatprep.subr.bf16.mxu0 0
    %1050 = vmatpush1.bf16.msra.mxu0 0
    %1051 = vmatprep.subr.bf16.mxu0 0
    %1052 = vmatpush1.bf16.msra.mxu0 0
    %1053 = vmatprep.subr.bf16.mxu0 0
    %1054 = vmatpush1.bf16.msra.mxu0 %v1035
    %1055 = vmatprep.subr.bf16.mxu0 0
    %1056 = vmatpush1.bf16.msra.mxu0 %v1034
    %1057 = vmatprep.subr.bf16.mxu0 0
    %1058 = vmatpush2.bf16.msra.mxu0 0
    %1059 = vmatprep.subr.bf16.mxu0 0
    %1060 = vmatpush2.bf16.msra.mxu0 0
    %1061 = vmatprep.subr.bf16.mxu0 0
    %1062 = vmatpush2.bf16.msra.mxu0 0
    %1063 = vmatprep.subr.bf16.mxu0 0
    %1064 = vmatpush2.bf16.msra.mxu0 0
    %1065 = vmatprep.subr.bf16.mxu0 0
    %1066 = vmatpush2.bf16.msra.mxu0 0
    %1067 = vmatprep.subr.bf16.mxu0 0
    %1068 = vmatpush2.bf16.msra.mxu0 0
    %1069 = vmatprep.subr.bf16.mxu0 0
    %1070 = vmatpush2.bf16.msra.mxu0 0
    %1071 = vmatprep.subr.bf16.mxu0 0
    %1072 = vmatpush2.bf16.msra.mxu0 0
    %1073 = vmatprep.mubr.bf16.mxu0 0
    %1074 = vmatmul.mubr.bf16.gmra.mxu0 %v1039
    %v1075 = vpop.f32.mrf.mxu0
    %v1076 = vadd.f32 %v1025, %v1075
    %v1077 = vpop.f32.mrf.mxu0
    %v1078 = vpop.f32.mrf.mxu0
    %v1079 = vadd.f32 %v1025, %v1078
    %v1080 = vpop.f32.mrf.mxu0
    %1081 = vdwg.mxu0
    %v1082 = vpack.c.bf16 %v31, %v30
    %v1083 = vlaneseq
    %v1084 = vshrl.u32 %v1083, 7
    %v1085 = vsub.s32 0, %v1084
    %v1086 = vrot.slane %v51, %v1085
    %v1091 = vunpack.c.l.b16 %v951
    %v1092 = vunpack.c.l.b16 %v952
    %v1093 = vunpack.c.l.b16 %v953
    %v1094 = vunpack.c.l.b16 %v954
    %v1095 = vpack.c.b16 %v1092, %v1091
    %v1096 = vpack.c.b16 %v1094, %v1093
    %v1100 = vsel %vm104, %v1082, 0
    %1102 = vmatprep.subr.bf16.mxu0 0
    %1103 = vmatpush1.bf16.msra.mxu0 0
    %1104 = vmatprep.subr.bf16.mxu0 0
    %1105 = vmatpush1.bf16.msra.mxu0 0
    %1106 = vmatprep.subr.bf16.mxu0 0
    %1107 = vmatpush1.bf16.msra.mxu0 0
    %1108 = vmatprep.subr.bf16.mxu0 0
    %1109 = vmatpush1.bf16.msra.mxu0 0
    %1110 = vmatprep.subr.bf16.mxu0 0
    %1111 = vmatpush1.bf16.msra.mxu0 0
    %1112 = vmatprep.subr.bf16.mxu0 0
    %1113 = vmatpush1.bf16.msra.mxu0 0
    %1114 = vmatprep.subr.bf16.mxu0 0
    %1115 = vmatpush1.bf16.msra.mxu0 %v1096
    %1116 = vmatprep.subr.bf16.mxu0 0
    %1117 = vmatpush1.bf16.msra.mxu0 %v1095
    %1118 = vmatprep.subr.bf16.mxu0 0
    %1119 = vmatpush2.bf16.msra.mxu0 0
    %1120 = vmatprep.subr.bf16.mxu0 0
    %1121 = vmatpush2.bf16.msra.mxu0 0
    %1122 = vmatprep.subr.bf16.mxu0 0
    %1123 = vmatpush2.bf16.msra.mxu0 0
    %1124 = vmatprep.subr.bf16.mxu0 0
    %1125 = vmatpush2.bf16.msra.mxu0 0
    %1126 = vmatprep.subr.bf16.mxu0 0
    %1127 = vmatpush2.bf16.msra.mxu0 0
    %1128 = vmatprep.subr.bf16.mxu0 0
    %1129 = vmatpush2.bf16.msra.mxu0 0
    %1130 = vmatprep.subr.bf16.mxu0 0
    %1131 = vmatpush2.bf16.msra.mxu0 0
    %1132 = vmatprep.subr.bf16.mxu0 0
    %1133 = vmatpush2.bf16.msra.mxu0 0
    %1134 = vmatprep.mubr.bf16.mxu0 0
    %1135 = vmatmul.mubr.bf16.gmra.mxu0 %v1100
    %v1136 = vpop.f32.mrf.mxu0
    %v1137 = vadd.f32 %v1086, %v1136
    %v1138 = vpop.f32.mrf.mxu0
    %v1139 = vpop.f32.mrf.mxu0
    %v1140 = vadd.f32 %v1086, %v1139
    %v1141 = vpop.f32.mrf.mxu0
    %1142 = vdwg.mxu0
    %v1143 = vpack.c.bf16 %v1018, %v1015
    %v1145 = vunpack.c.l.b16 %v1143
    %v1146 = vunpack.c.h.b16 %v1143
    %v1147 = vpack.c.b16 %v1145, %v1145
    %v1148 = vpack.c.b16 %v1146, %v1146
    %v1151 = vmul.bf16 %v34, %v1147
    %v1152 = vmul.bf16 %v35, %v1148
    %v1153 = vmul.bf16 %v36, %v1147
    %v1154 = vmul.bf16 %v37, %v1148
    %v1155 = vmul.bf16 %v38, %v1147
    %v1156 = vmul.bf16 %v39, %v1148
    %v1157 = vmul.bf16 %v40, %v1147
    %v1158 = vmul.bf16 %v41, %v1148
    %v1159 = vmul.bf16 %v42, %v1147
    %v1160 = vmul.bf16 %v43, %v1148
    %v1161 = vmul.bf16 %v44, %v1147
    %v1162 = vmul.bf16 %v45, %v1148
    %v1163 = vmul.bf16 %v46, %v1147
    %v1164 = vmul.bf16 %v47, %v1148
    %v1165 = vmul.bf16 %v48, %v1147
    %v1166 = vmul.bf16 %v49, %v1148
    %v1167 = vpack.c.bf16 %v1079, %v1076
    %v1184 = vunpack.c.l.b16 %v1151
    %v1185 = vunpack.c.l.b16 %v1152
    %v1186 = vunpack.c.l.b16 %v1153
    %v1187 = vunpack.c.l.b16 %v1154
    %v1188 = vunpack.c.l.b16 %v1155
    %v1189 = vunpack.c.l.b16 %v1156
    %v1190 = vunpack.c.l.b16 %v1157
    %v1191 = vunpack.c.l.b16 %v1158
    %v1192 = vunpack.c.l.b16 %v1159
    %v1193 = vunpack.c.l.b16 %v1160
    %v1194 = vunpack.c.l.b16 %v1161
    %v1195 = vunpack.c.l.b16 %v1162
    %v1196 = vunpack.c.l.b16 %v1163
    %v1197 = vunpack.c.l.b16 %v1164
    %v1198 = vunpack.c.l.b16 %v1165
    %v1199 = vunpack.c.l.b16 %v1166
    %v1200 = vpack.c.b16 %v1185, %v1184
    %v1201 = vpack.c.b16 %v1187, %v1186
    %v1202 = vpack.c.b16 %v1189, %v1188
    %v1203 = vpack.c.b16 %v1191, %v1190
    %v1204 = vpack.c.b16 %v1193, %v1192
    %v1205 = vpack.c.b16 %v1195, %v1194
    %v1206 = vpack.c.b16 %v1197, %v1196
    %v1207 = vpack.c.b16 %v1199, %v1198
    %v1209 = vsel %vm104, %v1200, 0
    %v1212 = vsel %vm104, %v1201, 0
    %v1215 = vsel %vm104, %v1202, 0
    %v1218 = vsel %vm104, %v1203, 0
    %v1221 = vsel %vm104, %v1204, 0
    %v1224 = vsel %vm104, %v1205, 0
    %v1227 = vsel %vm104, %v1206, 0
    %v1230 = vsel %vm104, %v1207, 0
    %v1233 = vsel %vm104, %v1167, 0
    %1235 = vmatprep.subr.bf16.mxu0 0
    %1236 = vmatpush1.bf16.xpose.msra.mxu0 0
    %1237 = vmatprep.subr.bf16.mxu0 0
    %1238 = vmatpush1.bf16.xpose.msra.mxu0 0
    %1239 = vmatprep.subr.bf16.mxu0 0
    %1240 = vmatpush1.bf16.xpose.msra.mxu0 0
    %1241 = vmatprep.subr.bf16.mxu0 0
    %1242 = vmatpush1.bf16.xpose.msra.mxu0 0
    %1243 = vmatprep.subr.bf16.mxu0 0
    %1244 = vmatpush1.bf16.xpose.msra.mxu0 0
    %1245 = vmatprep.subr.bf16.mxu0 0
    %1246 = vmatpush1.bf16.xpose.msra.mxu0 0
    %1247 = vmatprep.subr.bf16.mxu0 0
    %1248 = vmatpush1.bf16.xpose.msra.mxu0 0
    %1249 = vmatprep.subr.bf16.mxu0 0
    %1250 = vmatpush1.bf16.xpose.msra.mxu0 %v1233
    %1251 = vmatprep.subr.bf16.mxu0 0
    %1252 = vmatpush2.bf16.xpose.msra.mxu0 0
    %1253 = vmatprep.subr.bf16.mxu0 0
    %1254 = vmatpush2.bf16.xpose.msra.mxu0 0
    %1255 = vmatprep.subr.bf16.mxu0 0
    %1256 = vmatpush2.bf16.xpose.msra.mxu0 0
    %1257 = vmatprep.subr.bf16.mxu0 0
    %1258 = vmatpush2.bf16.xpose.msra.mxu0 0
    %1259 = vmatprep.subr.bf16.mxu0 0
    %1260 = vmatpush2.bf16.xpose.msra.mxu0 0
    %1261 = vmatprep.subr.bf16.mxu0 0
    %1262 = vmatpush2.bf16.xpose.msra.mxu0 0
    %1263 = vmatprep.subr.bf16.mxu0 0
    %1264 = vmatpush2.bf16.xpose.msra.mxu0 0
    %1265 = vmatprep.subr.bf16.mxu0 0
    %1266 = vmatpush2.bf16.xpose.msra.mxu0 0
    %1267 = vmatprep.mubr.bf16.mxu0 0
    %1268 = vmatmul.mubr.bf16.gmra.mxu0 %v1209
    %v1269 = vpop.f32.mrf.mxu0
    %v1270 = vadd.f32 %v924, %v1269
    %v1271 = vpop.f32.mrf.mxu0
    %v1272 = vpop.f32.mrf.mxu0
    %v1273 = vadd.f32 %v925, %v1272
    %v1274 = vpop.f32.mrf.mxu0
    %1275 = vmatprep.mubr.bf16.mxu0 0
    %1276 = vmatmul.mubr.bf16.gmra.mxu0 %v1212
    %v1277 = vpop.f32.mrf.mxu0
    %v1278 = vadd.f32 %v926, %v1277
    %v1279 = vpop.f32.mrf.mxu0
    %v1280 = vpop.f32.mrf.mxu0
    %v1281 = vadd.f32 %v927, %v1280
    %v1282 = vpop.f32.mrf.mxu0
    %1283 = vmatprep.mubr.bf16.mxu0 0
    %1284 = vmatmul.mubr.bf16.gmra.mxu0 %v1215
    %v1285 = vpop.f32.mrf.mxu0
    %v1286 = vadd.f32 %v928, %v1285
    %v1287 = vpop.f32.mrf.mxu0
    %v1288 = vpop.f32.mrf.mxu0
    %v1289 = vadd.f32 %v929, %v1288
    %v1290 = vpop.f32.mrf.mxu0
    %1291 = vmatprep.mubr.bf16.mxu0 0
    %1292 = vmatmul.mubr.bf16.gmra.mxu0 %v1218
    %v1293 = vpop.f32.mrf.mxu0
    %v1294 = vadd.f32 %v930, %v1293
    %v1295 = vpop.f32.mrf.mxu0
    %v1296 = vpop.f32.mrf.mxu0
    %v1297 = vadd.f32 %v931, %v1296
    %v1298 = vpop.f32.mrf.mxu0
    %1299 = vmatprep.mubr.bf16.mxu0 0
    %1300 = vmatmul.mubr.bf16.gmra.mxu0 %v1221
    %v1301 = vpop.f32.mrf.mxu0
    %v1302 = vadd.f32 %v932, %v1301
    %v1303 = vpop.f32.mrf.mxu0
    %v1304 = vpop.f32.mrf.mxu0
    %v1305 = vadd.f32 %v933, %v1304
    %v1306 = vpop.f32.mrf.mxu0
    %1307 = vmatprep.mubr.bf16.mxu0 0
    %1308 = vmatmul.mubr.bf16.gmra.mxu0 %v1224
    %v1309 = vpop.f32.mrf.mxu0
    %v1310 = vadd.f32 %v934, %v1309
    %v1311 = vpop.f32.mrf.mxu0
    %v1312 = vpop.f32.mrf.mxu0
    %v1313 = vadd.f32 %v935, %v1312
    %v1314 = vpop.f32.mrf.mxu0
    %1315 = vmatprep.mubr.bf16.mxu0 0
    %1316 = vmatmul.mubr.bf16.gmra.mxu0 %v1227
    %v1317 = vpop.f32.mrf.mxu0
    %v1318 = vadd.f32 %v936, %v1317
    %v1319 = vpop.f32.mrf.mxu0
    %v1320 = vpop.f32.mrf.mxu0
    %v1321 = vadd.f32 %v937, %v1320
    %v1322 = vpop.f32.mrf.mxu0
    %1323 = vmatprep.mubr.bf16.mxu0 0
    %1324 = vmatmul.mubr.bf16.gmra.mxu0 %v1230
    %v1325 = vpop.f32.mrf.mxu0
    %v1326 = vadd.f32 %v938, %v1325
    %v1327 = vpop.f32.mrf.mxu0
    %v1328 = vpop.f32.mrf.mxu0
    %v1329 = vadd.f32 %v939, %v1328
    %v1330 = vpop.f32.mrf.mxu0
    %1331 = vdwg.mxu0
    %v1332 = vsel %vm452, %v1270, -inf
    %1333 = vmax.xlane.f32.xlu0 %v1332
    %v1334 = vpop.xlane.xlu0 %1333
    %v1335 = vsel %vm452, %v1273, -inf
    %1336 = vmax.xlane.f32.xlu0 %v1335
    %v1337 = vpop.xlane.xlu0 %1336
    %v1338 = vsel %vm452, %v1278, -inf
    %1339 = vmax.xlane.f32.xlu0 %v1338
    %v1340 = vpop.xlane.xlu0 %1339
    %v1341 = vsel %vm452, %v1281, -inf
    %1342 = vmax.xlane.f32.xlu0 %v1341
    %v1343 = vpop.xlane.xlu0 %1342
    %v1344 = vsel %vm452, %v1286, -inf
    %1345 = vmax.xlane.f32.xlu0 %v1344
    %v1346 = vpop.xlane.xlu0 %1345
    %v1347 = vsel %vm452, %v1289, -inf
    %1348 = vmax.xlane.f32.xlu0 %v1347
    %v1349 = vpop.xlane.xlu0 %1348
    %v1350 = vsel %vm452, %v1294, -inf
    %1351 = vmax.xlane.f32.xlu0 %v1350
    %v1352 = vpop.xlane.xlu0 %1351
    %v1353 = vsel %vm452, %v1297, -inf
    %1354 = vmax.xlane.f32.xlu0 %v1353
    %v1355 = vpop.xlane.xlu0 %1354
    %v1356 = vsel %vm452, %v1302, -inf
    %1357 = vmax.xlane.f32.xlu0 %v1356
    %v1358 = vpop.xlane.xlu0 %1357
    %v1359 = vsel %vm452, %v1305, -inf
    %1360 = vmax.xlane.f32.xlu0 %v1359
    %v1361 = vpop.xlane.xlu0 %1360
    %v1362 = vsel %vm452, %v1310, -inf
    %1363 = vmax.xlane.f32.xlu0 %v1362
    %v1364 = vpop.xlane.xlu0 %1363
    %v1365 = vsel %vm452, %v1313, -inf
    %1366 = vmax.xlane.f32.xlu0 %v1365
    %v1367 = vpop.xlane.xlu0 %1366
    %v1368 = vsel %vm452, %v1318, -inf
    %1369 = vmax.xlane.f32.xlu0 %v1368
    %v1370 = vpop.xlane.xlu0 %1369
    %v1371 = vsel %vm452, %v1321, -inf
    %1372 = vmax.xlane.f32.xlu0 %v1371
    %v1373 = vpop.xlane.xlu0 %1372
    %v1374 = vsel %vm452, %v1326, -inf
    %1375 = vmax.xlane.f32.xlu0 %v1374
    %v1376 = vpop.xlane.xlu0 %1375
    %v1377 = vsel %vm452, %v1329, -inf
    %1378 = vmax.xlane.f32.xlu0 %v1377
    %v1379 = vpop.xlane.xlu0 %1378
    %v1380 = vsub.f32 %v1270, %v1334
    %v1381 = vsub.f32 %v1273, %v1337
    %v1382 = vsub.f32 %v1278, %v1340
    %v1383 = vsub.f32 %v1281, %v1343
    %v1384 = vsub.f32 %v1286, %v1346
    %v1385 = vsub.f32 %v1289, %v1349
    %v1386 = vsub.f32 %v1294, %v1352
    %v1387 = vsub.f32 %v1297, %v1355
    %v1388 = vsub.f32 %v1302, %v1358
    %v1389 = vsub.f32 %v1305, %v1361
    %v1390 = vsub.f32 %v1310, %v1364
    %v1391 = vsub.f32 %v1313, %v1367
    %v1392 = vsub.f32 %v1318, %v1370
    %v1393 = vsub.f32 %v1321, %v1373
    %v1394 = vsub.f32 %v1326, %v1376
    %v1395 = vsub.f32 %v1329, %v1379
    %v1396 = vmul.f32 %v1380, 1.442695
    %v1397 = vpow.pop %v1396
    %v1398 = vmul.f32 %v1381, 1.442695
    %v1399 = vpow.pop %v1398
    %v1400 = vmul.f32 %v1382, 1.442695
    %v1401 = vpow.pop %v1400
    %v1402 = vmul.f32 %v1383, 1.442695
    %v1403 = vpow.pop %v1402
    %v1404 = vmul.f32 %v1384, 1.442695
    %v1405 = vpow.pop %v1404
    %v1406 = vmul.f32 %v1385, 1.442695
    %v1407 = vpow.pop %v1406
    %v1408 = vmul.f32 %v1386, 1.442695
    %v1409 = vpow.pop %v1408
    %v1410 = vmul.f32 %v1387, 1.442695
    %v1411 = vpow.pop %v1410
    %v1412 = vmul.f32 %v1388, 1.442695
    %v1413 = vpow.pop %v1412
    %v1414 = vmul.f32 %v1389, 1.442695
    %v1415 = vpow.pop %v1414
    %v1416 = vmul.f32 %v1390, 1.442695
    %v1417 = vpow.pop %v1416
    %v1418 = vmul.f32 %v1391, 1.442695
    %v1419 = vpow.pop %v1418
    %v1420 = vmul.f32 %v1392, 1.442695
    %v1421 = vpow.pop %v1420
    %v1422 = vmul.f32 %v1393, 1.442695
    %v1423 = vpow.pop %v1422
    %v1424 = vmul.f32 %v1394, 1.442695
    %v1425 = vpow.pop %v1424
    %v1426 = vmul.f32 %v1395, 1.442695
    %v1427 = vpow.pop %v1426
    %v1428 = vsel %vm452, %v1397, 0.0
    %1429 = vadd.xlane.f32.xlu0 %v1428
    %v1430 = vpop.xlane.xlu0 %1429
    %v1431 = vsel %vm452, %v1399, 0.0
    %1432 = vadd.xlane.f32.xlu0 %v1431
    %v1433 = vpop.xlane.xlu0 %1432
    %v1434 = vsel %vm452, %v1401, 0.0
    %1435 = vadd.xlane.f32.xlu0 %v1434
    %v1436 = vpop.xlane.xlu0 %1435
    %v1437 = vsel %vm452, %v1403, 0.0
    %1438 = vadd.xlane.f32.xlu0 %v1437
    %v1439 = vpop.xlane.xlu0 %1438
    %v1440 = vsel %vm452, %v1405, 0.0
    %1441 = vadd.xlane.f32.xlu0 %v1440
    %v1442 = vpop.xlane.xlu0 %1441
    %v1443 = vsel %vm452, %v1407, 0.0
    %1444 = vadd.xlane.f32.xlu0 %v1443
    %v1445 = vpop.xlane.xlu0 %1444
    %v1446 = vsel %vm452, %v1409, 0.0
    %1447 = vadd.xlane.f32.xlu0 %v1446
    %v1448 = vpop.xlane.xlu0 %1447
    %v1449 = vsel %vm452, %v1411, 0.0
    %1450 = vadd.xlane.f32.xlu0 %v1449
    %v1451 = vpop.xlane.xlu0 %1450
    %v1452 = vsel %vm452, %v1413, 0.0
    %1453 = vadd.xlane.f32.xlu0 %v1452
    %v1454 = vpop.xlane.xlu0 %1453
    %v1455 = vsel %vm452, %v1415, 0.0
    %1456 = vadd.xlane.f32.xlu0 %v1455
    %v1457 = vpop.xlane.xlu0 %1456
    %v1458 = vsel %vm452, %v1417, 0.0
    %1459 = vadd.xlane.f32.xlu0 %v1458
    %v1460 = vpop.xlane.xlu0 %1459
    %v1461 = vsel %vm452, %v1419, 0.0
    %1462 = vadd.xlane.f32.xlu0 %v1461
    %v1463 = vpop.xlane.xlu0 %1462
    %v1464 = vsel %vm452, %v1421, 0.0
    %1465 = vadd.xlane.f32.xlu0 %v1464
    %v1466 = vpop.xlane.xlu0 %1465
    %v1467 = vsel %vm452, %v1423, 0.0
    %1468 = vadd.xlane.f32.xlu0 %v1467
    %v1469 = vpop.xlane.xlu0 %1468
    %v1470 = vsel %vm452, %v1425, 0.0
    %1471 = vadd.xlane.f32.xlu0 %v1470
    %v1472 = vpop.xlane.xlu0 %1471
    %v1473 = vsel %vm452, %v1427, 0.0
    %1474 = vadd.xlane.f32.xlu0 %v1473
    %v1475 = vpop.xlane.xlu0 %1474
    %v1476 = vrcp.pop %v1430
    %v1477 = vrcp.pop %v1433
    %v1478 = vrcp.pop %v1436
    %v1479 = vrcp.pop %v1439
    %v1480 = vrcp.pop %v1442
    %v1481 = vrcp.pop %v1445
    %v1482 = vrcp.pop %v1448
    %v1483 = vrcp.pop %v1451
    %v1484 = vrcp.pop %v1454
    %v1485 = vrcp.pop %v1457
    %v1486 = vrcp.pop %v1460
    %v1487 = vrcp.pop %v1463
    %v1488 = vrcp.pop %v1466
    %v1489 = vrcp.pop %v1469
    %v1490 = vrcp.pop %v1472
    %v1491 = vrcp.pop %v1475
    %v1492 = vmul.f32 %v1397, %v1476
    %v1493 = vmul.f32 %v1399, %v1477
    %v1494 = vmul.f32 %v1401, %v1478
    %v1495 = vmul.f32 %v1403, %v1479
    %v1496 = vmul.f32 %v1405, %v1480
    %v1497 = vmul.f32 %v1407, %v1481
    %v1498 = vmul.f32 %v1409, %v1482
    %v1499 = vmul.f32 %v1411, %v1483
    %v1500 = vmul.f32 %v1413, %v1484
    %v1501 = vmul.f32 %v1415, %v1485
    %v1502 = vmul.f32 %v1417, %v1486
    %v1503 = vmul.f32 %v1419, %v1487
    %v1504 = vmul.f32 %v1421, %v1488
    %v1505 = vmul.f32 %v1423, %v1489
    %v1506 = vmul.f32 %v1425, %v1490
    %v1507 = vmul.f32 %v1427, %v1491
    %v1508 = vpack.c.bf16 %v1493, %v1492
    %v1509 = vpack.c.bf16 %v1495, %v1494
    %v1510 = vpack.c.bf16 %v1497, %v1496
    %v1511 = vpack.c.bf16 %v1499, %v1498
    %v1512 = vpack.c.bf16 %v1501, %v1500
    %v1513 = vpack.c.bf16 %v1503, %v1502
    %v1514 = vpack.c.bf16 %v1505, %v1504
    %v1515 = vpack.c.bf16 %v1507, %v1506
    %v1516 = vpack.c.bf16 %v1140, %v1137
    %v1518 = vsel %vm452, %v1508, 0
    %v1521 = vsel %vm452, %v1509, 0
    %v1524 = vsel %vm452, %v1510, 0
    %v1527 = vsel %vm452, %v1511, 0
    %v1530 = vsel %vm452, %v1512, 0
    %v1533 = vsel %vm452, %v1513, 0
    %v1536 = vsel %vm452, %v1514, 0
    %v1539 = vsel %vm452, %v1515, 0
    %1541 = vmatprep.subr.bf16.mxu0 0
    %1542 = vmatpush1.bf16.msra.mxu0 0
    %1543 = vmatprep.subr.bf16.mxu0 0
    %1544 = vmatpush1.bf16.msra.mxu0 0
    %1545 = vmatprep.subr.bf16.mxu0 0
    %1546 = vmatpush1.bf16.msra.mxu0 0
    %1547 = vmatprep.subr.bf16.mxu0 0
    %1548 = vmatpush1.bf16.msra.mxu0 0
    %1549 = vmatprep.subr.bf16.mxu0 0
    %1550 = vmatpush1.bf16.msra.mxu0 0
    %1551 = vmatprep.subr.bf16.mxu0 0
    %1552 = vmatpush1.bf16.msra.mxu0 0
    %1553 = vmatprep.subr.bf16.mxu0 0
    %1554 = vmatpush1.bf16.msra.mxu0 0
    %1555 = vmatprep.subr.bf16.mxu0 0
    %1556 = vmatpush1.bf16.msra.mxu0 %v1516
    %1557 = vmatprep.subr.bf16.mxu0 0
    %1558 = vmatpush2.bf16.msra.mxu0 0
    %1559 = vmatprep.subr.bf16.mxu0 0
    %1560 = vmatpush2.bf16.msra.mxu0 0
    %1561 = vmatprep.subr.bf16.mxu0 0
    %1562 = vmatpush2.bf16.msra.mxu0 0
    %1563 = vmatprep.subr.bf16.mxu0 0
    %1564 = vmatpush2.bf16.msra.mxu0 0
    %1565 = vmatprep.subr.bf16.mxu0 0
    %1566 = vmatpush2.bf16.msra.mxu0 0
    %1567 = vmatprep.subr.bf16.mxu0 0
    %1568 = vmatpush2.bf16.msra.mxu0 0
    %1569 = vmatprep.subr.bf16.mxu0 0
    %1570 = vmatpush2.bf16.msra.mxu0 0
    %1571 = vmatprep.subr.bf16.mxu0 0
    %1572 = vmatpush2.bf16.msra.mxu0 0
    %1573 = vmatprep.mubr.bf16.mxu0 0
    %1574 = vmatmul.mubr.bf16.gmra.mxu0 %v1518
    %v1575 = vpop.f32.mrf.mxu0
    %v1576 = vadd.f32 0.0, %v1575
    %v1577 = vpop.f32.mrf.mxu0
    %v1578 = vpop.f32.mrf.mxu0
    %v1579 = vadd.f32 0.0, %v1578
    %v1580 = vpop.f32.mrf.mxu0
    %1581 = vmatprep.mubr.bf16.mxu0 0
    %1582 = vmatmul.mubr.bf16.gmra.mxu0 %v1521
    %v1583 = vpop.f32.mrf.mxu0
    %v1584 = vadd.f32 0.0, %v1583
    %v1585 = vpop.f32.mrf.mxu0
    %v1586 = vpop.f32.mrf.mxu0
    %v1587 = vadd.f32 0.0, %v1586
    %v1588 = vpop.f32.mrf.mxu0
    %1589 = vmatprep.mubr.bf16.mxu0 0
    %1590 = vmatmul.mubr.bf16.gmra.mxu0 %v1524
    %v1591 = vpop.f32.mrf.mxu0
    %v1592 = vadd.f32 0.0, %v1591
    %v1593 = vpop.f32.mrf.mxu0
    %v1594 = vpop.f32.mrf.mxu0
    %v1595 = vadd.f32 0.0, %v1594
    %v1596 = vpop.f32.mrf.mxu0
    %1597 = vmatprep.mubr.bf16.mxu0 0
    %1598 = vmatmul.mubr.bf16.gmra.mxu0 %v1527
    %v1599 = vpop.f32.mrf.mxu0
    %v1600 = vadd.f32 0.0, %v1599
    %v1601 = vpop.f32.mrf.mxu0
    %v1602 = vpop.f32.mrf.mxu0
    %v1603 = vadd.f32 0.0, %v1602
    %v1604 = vpop.f32.mrf.mxu0
    %1605 = vmatprep.mubr.bf16.mxu0 0
    %1606 = vmatmul.mubr.bf16.gmra.mxu0 %v1530
    %v1607 = vpop.f32.mrf.mxu0
    %v1608 = vadd.f32 0.0, %v1607
    %v1609 = vpop.f32.mrf.mxu0
    %v1610 = vpop.f32.mrf.mxu0
    %v1611 = vadd.f32 0.0, %v1610
    %v1612 = vpop.f32.mrf.mxu0
    %1613 = vmatprep.mubr.bf16.mxu0 0
    %1614 = vmatmul.mubr.bf16.gmra.mxu0 %v1533
    %v1615 = vpop.f32.mrf.mxu0
    %v1616 = vadd.f32 0.0, %v1615
    %v1617 = vpop.f32.mrf.mxu0
    %v1618 = vpop.f32.mrf.mxu0
    %v1619 = vadd.f32 0.0, %v1618
    %v1620 = vpop.f32.mrf.mxu0
    %1621 = vmatprep.mubr.bf16.mxu0 0
    %1622 = vmatmul.mubr.bf16.gmra.mxu0 %v1536
    %v1623 = vpop.f32.mrf.mxu0
    %v1624 = vadd.f32 0.0, %v1623
    %v1625 = vpop.f32.mrf.mxu0
    %v1626 = vpop.f32.mrf.mxu0
    %v1627 = vadd.f32 0.0, %v1626
    %v1628 = vpop.f32.mrf.mxu0
    %1629 = vmatprep.mubr.bf16.mxu0 0
    %1630 = vmatmul.mubr.bf16.gmra.mxu0 %v1539
    %v1631 = vpop.f32.mrf.mxu0
    %v1632 = vadd.f32 0.0, %v1631
    %v1633 = vpop.f32.mrf.mxu0
    %v1634 = vpop.f32.mrf.mxu0
    %v1635 = vadd.f32 0.0, %v1634
    %v1636 = vpop.f32.mrf.mxu0
    %1637 = vdwg.mxu0
    %v1638 = vmul.f32 %v1576, %v759
    %v1639 = vmul.f32 %v1579, %v760
    %v1640 = vmul.f32 %v1584, %v761
    %v1641 = vmul.f32 %v1587, %v762
    %v1642 = vmul.f32 %v1592, %v763
    %v1643 = vmul.f32 %v1595, %v764
    %v1644 = vmul.f32 %v1600, %v765
    %v1645 = vmul.f32 %v1603, %v766
    %v1646 = vmul.f32 %v1608, %v767
    %v1647 = vmul.f32 %v1611, %v768
    %v1648 = vmul.f32 %v1616, %v769
    %v1649 = vmul.f32 %v1619, %v770
    %v1650 = vmul.f32 %v1624, %v771
    %v1651 = vmul.f32 %v1627, %v772
    %v1652 = vmul.f32 %v1632, %v773
    %v1653 = vmul.f32 %v1635, %v774
    %v1654 = vsel %vm104, %v1638, 0.0
    %v1655 = vsel %vm104, %v1640, 0.0
    %v1656 = vadd.f32 %v1654, %v1655
    %v1657 = vsel %vm104, %v1642, 0.0
    %v1658 = vadd.f32 %v1656, %v1657
    %v1659 = vsel %vm104, %v1644, 0.0
    %v1660 = vadd.f32 %v1658, %v1659
    %v1661 = vsel %vm104, %v1646, 0.0
    %v1662 = vadd.f32 %v1660, %v1661
    %v1663 = vsel %vm104, %v1648, 0.0
    %v1664 = vadd.f32 %v1662, %v1663
    %v1665 = vsel %vm104, %v1650, 0.0
    %v1666 = vadd.f32 %v1664, %v1665
    %v1667 = vsel %vm104, %v1652, 0.0
    %v1668 = vadd.f32 %v1666, %v1667
    %v1669 = vsel %vm104, %v1639, 0.0
    %v1670 = vsel %vm104, %v1641, 0.0
    %v1671 = vadd.f32 %v1669, %v1670
    %v1672 = vsel %vm104, %v1643, 0.0
    %v1673 = vadd.f32 %v1671, %v1672
    %v1674 = vsel %vm104, %v1645, 0.0
    %v1675 = vadd.f32 %v1673, %v1674
    %v1676 = vsel %vm104, %v1647, 0.0
    %v1677 = vadd.f32 %v1675, %v1676
    %v1678 = vsel %vm104, %v1649, 0.0
    %v1679 = vadd.f32 %v1677, %v1678
    %v1680 = vsel %vm104, %v1651, 0.0
    %v1681 = vadd.f32 %v1679, %v1680
    %v1682 = vsel %vm104, %v1653, 0.0
    %v1683 = vadd.f32 %v1681, %v1682
    %v1684 = vpack.c.bf16 %v1683, %v1668
    %v1685 = vlaneseq
    %v1686 = vshrl.u32 %v1685, 7
    %v1687 = vsub.s32 1, %v1686
    %v1688 = vrot.slane %v51, %v1687
    %v1693 = vunpack.c.l.b16 %v956
    %v1694 = vunpack.c.l.b16 %v957
    %v1695 = vunpack.c.l.b16 %v958
    %v1696 = vunpack.c.l.b16 %v959
    %v1697 = vpack.c.b16 %v1694, %v1693
    %v1698 = vpack.c.b16 %v1696, %v1695
    %v1702 = vsel %vm104, %v1684, 0
    %1704 = vmatprep.subr.bf16.mxu0 0
    %1705 = vmatpush1.bf16.msra.mxu0 0
    %1706 = vmatprep.subr.bf16.mxu0 0
    %1707 = vmatpush1.bf16.msra.mxu0 0
    %1708 = vmatprep.subr.bf16.mxu0 0
    %1709 = vmatpush1.bf16.msra.mxu0 0
    %1710 = vmatprep.subr.bf16.mxu0 0
    %1711 = vmatpush1.bf16.msra.mxu0 0
    %1712 = vmatprep.subr.bf16.mxu0 0
    %1713 = vmatpush1.bf16.msra.mxu0 0
    %1714 = vmatprep.subr.bf16.mxu0 0
    %1715 = vmatpush1.bf16.msra.mxu0 0
    %1716 = vmatprep.subr.bf16.mxu0 0
    %1717 = vmatpush1.bf16.msra.mxu0 %v1698
    %1718 = vmatprep.subr.bf16.mxu0 0
    %1719 = vmatpush1.bf16.msra.mxu0 %v1697
    %1720 = vmatprep.subr.bf16.mxu0 0
    %1721 = vmatpush2.bf16.msra.mxu0 0
    %1722 = vmatprep.subr.bf16.mxu0 0
    %1723 = vmatpush2.bf16.msra.mxu0 0
    %1724 = vmatprep.subr.bf16.mxu0 0
    %1725 = vmatpush2.bf16.msra.mxu0 0
    %1726 = vmatprep.subr.bf16.mxu0 0
    %1727 = vmatpush2.bf16.msra.mxu0 0
    %1728 = vmatprep.subr.bf16.mxu0 0
    %1729 = vmatpush2.bf16.msra.mxu0 0
    %1730 = vmatprep.subr.bf16.mxu0 0
    %1731 = vmatpush2.bf16.msra.mxu0 0
    %1732 = vmatprep.subr.bf16.mxu0 0
    %1733 = vmatpush2.bf16.msra.mxu0 0
    %1734 = vmatprep.subr.bf16.mxu0 0
    %1735 = vmatpush2.bf16.msra.mxu0 0
    %1736 = vmatprep.mubr.bf16.mxu0 0
    %1737 = vmatmul.mubr.bf16.gmra.mxu0 %v1702
    %v1738 = vpop.f32.mrf.mxu0
    %v1739 = vadd.f32 %v1688, %v1738
    %v1740 = vpop.f32.mrf.mxu0
    %v1741 = vpop.f32.mrf.mxu0
    %v1742 = vadd.f32 %v1688, %v1741
    %v1743 = vpop.f32.mrf.mxu0
    %1744 = vdwg.mxu0
    %v1745 = vadd.f32 %v1739, %v921
    %v1746 = vadd.f32 %v1742, %v922
    %v1747 = vsel %vm104, %v1745, 0.0
    %1748 = vadd.xlane.f32.xlu0 %v1747
    %v1749 = vpop.xlane.xlu0 %1748
    %v1750 = vsel %vm104, %v1746, 0.0
    %1751 = vadd.xlane.f32.xlu0 %v1750
    %v1752 = vpop.xlane.xlu0 %1751
    %v1753 = vmul.f32 %v1749, %v890
    %v1754 = vmul.f32 %v1752, %v890
    %v1755 = vsub.f32 %v1745, %v1753
    %v1756 = vsub.f32 %v1746, %v1754
    %v1757 = vmul.f32 %v1755, %v1755
    %v1758 = vmul.f32 %v1756, %v1756
    %v1759 = vsel %vm104, %v1757, 0.0
    %1760 = vadd.xlane.f32.xlu0 %v1759
    %v1761 = vpop.xlane.xlu0 %1760
    %v1762 = vsel %vm104, %v1758, 0.0
    %1763 = vadd.xlane.f32.xlu0 %v1762
    %v1764 = vpop.xlane.xlu0 %1763
    %v1765 = vmul.f32 %v1761, %v890
    %v1766 = vmul.f32 %v1764, %v890
    %v1767 = vadd.f32 %v1765, 1e-05
    %v1768 = vadd.f32 %v1766, 1e-05
    %v1769 = vrsqrt.pop %v1767
    %v1770 = vrsqrt.pop %v1768
    %v1771 = vmul.f32 %v1755, %v1769
    %v1772 = vmul.f32 %v1756, %v1770
    %v1773 = vlaneseq
    %v1774 = vshrl.u32 %v1773, 7
    %v1775 = vsub.s32 2, %v1774
    %v1776 = vrot.slane %v51, %v1775
    %v1777 = vmul.f32 %v1771, %v1776
    %v1778 = vmul.f32 %v1772, %v1776
    %v1779 = vlaneseq
    %v1780 = vshrl.u32 %v1779, 7
    %v1781 = vsub.s32 3, %v1780
    %v1782 = vrot.slane %v51, %v1781
    %v1783 = vadd.f32 %v1777, %v1782
    %v1784 = vadd.f32 %v1778, %v1782
    %v1785 = vpack.c.bf16 %v1784, %v1783
    %s1786 = scalar_lea.vmem %s5, 128
    %v1787 = vld [vmem:[%s1786] sm:$0xf]
    %v1788 = vld [vmem:[%s1786 + $0x4] sm:$0xf]
    %v1789 = vld [vmem:[%s1786 + $0x8] sm:$0xf]
    %v1790 = vld [vmem:[%s1786 + $0xc] sm:$0xf]
    %v1791 = vlaneseq
    %v1792 = vshrl.u32 %v1791, 7
    %v1793 = vsub.s32 4, %v1792
    %v1794 = vrot.slane %v51, %v1793
    %v1799 = vunpack.c.l.b16 %v1787
    %v1800 = vunpack.c.l.b16 %v1788
    %v1801 = vunpack.c.l.b16 %v1789
    %v1802 = vunpack.c.l.b16 %v1790
    %v1803 = vpack.c.b16 %v1800, %v1799
    %v1804 = vpack.c.b16 %v1802, %v1801
    %v1808 = vsel %vm104, %v1785, 0
    %1810 = vmatprep.subr.bf16.mxu0 0
    %1811 = vmatpush1.bf16.msra.mxu0 0
    %1812 = vmatprep.subr.bf16.mxu0 0
    %1813 = vmatpush1.bf16.msra.mxu0 0
    %1814 = vmatprep.subr.bf16.mxu0 0
    %1815 = vmatpush1.bf16.msra.mxu0 0
    %1816 = vmatprep.subr.bf16.mxu0 0
    %1817 = vmatpush1.bf16.msra.mxu0 0
    %1818 = vmatprep.subr.bf16.mxu0 0
    %1819 = vmatpush1.bf16.msra.mxu0 0
    %1820 = vmatprep.subr.bf16.mxu0 0
    %1821 = vmatpush1.bf16.msra.mxu0 0
    %1822 = vmatprep.subr.bf16.mxu0 0
    %1823 = vmatpush1.bf16.msra.mxu0 %v1804
    %1824 = vmatprep.subr.bf16.mxu0 0
    %1825 = vmatpush1.bf16.msra.mxu0 %v1803
    %1826 = vmatprep.subr.bf16.mxu0 0
    %1827 = vmatpush2.bf16.msra.mxu0 0
    %1828 = vmatprep.subr.bf16.mxu0 0
    %1829 = vmatpush2.bf16.msra.mxu0 0
    %1830 = vmatprep.subr.bf16.mxu0 0
    %1831 = vmatpush2.bf16.msra.mxu0 0
    %1832 = vmatprep.subr.bf16.mxu0 0
    %1833 = vmatpush2.bf16.msra.mxu0 0
    %1834 = vmatprep.subr.bf16.mxu0 0
    %1835 = vmatpush2.bf16.msra.mxu0 0
    %1836 = vmatprep.subr.bf16.mxu0 0
    %1837 = vmatpush2.bf16.msra.mxu0 0
    %1838 = vmatprep.subr.bf16.mxu0 0
    %1839 = vmatpush2.bf16.msra.mxu0 0
    %1840 = vmatprep.subr.bf16.mxu0 0
    %1841 = vmatpush2.bf16.msra.mxu0 0
    %1842 = vmatprep.mubr.bf16.mxu0 0
    %1843 = vmatmul.mubr.bf16.gmra.mxu0 %v1808
    %v1844 = vpop.f32.mrf.mxu0
    %v1845 = vadd.f32 %v1794, %v1844
    %v1846 = vpop.f32.mrf.mxu0
    %v1847 = vpop.f32.mrf.mxu0
    %v1848 = vadd.f32 %v1794, %v1847
    %v1849 = vpop.f32.mrf.mxu0
    %1850 = vdwg.mxu0
    %v1851 = vmax.f32 %v1845, 0.0
    %v1852 = vmax.f32 %v1848, 0.0
    %v1853 = vpack.c.bf16 %v1852, %v1851
    %s1854 = scalar_lea.vmem %s5, 144
    %v1855 = vld [vmem:[%s1854] sm:$0xf]
    %v1856 = vld [vmem:[%s1854 + $0x4] sm:$0xf]
    %v1857 = vld [vmem:[%s1854 + $0x8] sm:$0xf]
    %v1858 = vld [vmem:[%s1854 + $0xc] sm:$0xf]
    %v1859 = vlaneseq
    %v1860 = vshrl.u32 %v1859, 7
    %v1861 = vsub.s32 5, %v1860
    %v1862 = vrot.slane %v51, %v1861
    %v1867 = vunpack.c.l.b16 %v1855
    %v1868 = vunpack.c.l.b16 %v1856
    %v1869 = vunpack.c.l.b16 %v1857
    %v1870 = vunpack.c.l.b16 %v1858
    %v1871 = vpack.c.b16 %v1868, %v1867
    %v1872 = vpack.c.b16 %v1870, %v1869
    %v1876 = vsel %vm104, %v1853, 0
    %1878 = vmatprep.subr.bf16.mxu0 0
    %1879 = vmatpush1.bf16.msra.mxu0 0
    %1880 = vmatprep.subr.bf16.mxu0 0
    %1881 = vmatpush1.bf16.msra.mxu0 0
    %1882 = vmatprep.subr.bf16.mxu0 0
    %1883 = vmatpush1.bf16.msra.mxu0 0
    %1884 = vmatprep.subr.bf16.mxu0 0
    %1885 = vmatpush1.bf16.msra.mxu0 0
    %1886 = vmatprep.subr.bf16.mxu0 0
    %1887 = vmatpush1.bf16.msra.mxu0 0
    %1888 = vmatprep.subr.bf16.mxu0 0
    %1889 = vmatpush1.bf16.msra.mxu0 0
    %1890 = vmatprep.subr.bf16.mxu0 0
    %1891 = vmatpush1.bf16.msra.mxu0 %v1872
    %1892 = vmatprep.subr.bf16.mxu0 0
    %1893 = vmatpush1.bf16.msra.mxu0 %v1871
    %1894 = vmatprep.subr.bf16.mxu0 0
    %1895 = vmatpush2.bf16.msra.mxu0 0
    %1896 = vmatprep.subr.bf16.mxu0 0
    %1897 = vmatpush2.bf16.msra.mxu0 0
    %1898 = vmatprep.subr.bf16.mxu0 0
    %1899 = vmatpush2.bf16.msra.mxu0 0
    %1900 = vmatprep.subr.bf16.mxu0 0
    %1901 = vmatpush2.bf16.msra.mxu0 0
    %1902 = vmatprep.subr.bf16.mxu0 0
    %1903 = vmatpush2.bf16.msra.mxu0 0
    %1904 = vmatprep.subr.bf16.mxu0 0
    %1905 = vmatpush2.bf16.msra.mxu0 0
    %1906 = vmatprep.subr.bf16.mxu0 0
    %1907 = vmatpush2.bf16.msra.mxu0 0
    %1908 = vmatprep.subr.bf16.mxu0 0
    %1909 = vmatpush2.bf16.msra.mxu0 0
    %1910 = vmatprep.mubr.bf16.mxu0 0
    %1911 = vmatmul.mubr.bf16.gmra.mxu0 %v1876
    %v1912 = vpop.f32.mrf.mxu0
    %v1913 = vadd.f32 %v1862, %v1912
    %v1914 = vpop.f32.mrf.mxu0
    %v1915 = vpop.f32.mrf.mxu0
    %v1916 = vadd.f32 %v1862, %v1915
    %v1917 = vpop.f32.mrf.mxu0
    %1918 = vdwg.mxu0
    %v1919 = vadd.f32 %v1913, %v1783
    %v1920 = vadd.f32 %v1916, %v1784
    %v1921 = vsel %vm104, %v1919, 0.0
    %1922 = vadd.xlane.f32.xlu0 %v1921
    %v1923 = vpop.xlane.xlu0 %1922
    %v1924 = vsel %vm104, %v1920, 0.0
    %1925 = vadd.xlane.f32.xlu0 %v1924
    %v1926 = vpop.xlane.xlu0 %1925
    %v1927 = vmul.f32 %v1923, %v890
    %v1928 = vmul.f32 %v1926, %v890
    %v1929 = vsub.f32 %v1919, %v1927
    %v1930 = vsub.f32 %v1920, %v1928
    %v1931 = vmul.f32 %v1929, %v1929
    %v1932 = vmul.f32 %v1930, %v1930
    %v1933 = vsel %vm104, %v1931, 0.0
    %1934 = vadd.xlane.f32.xlu0 %v1933
    %v1935 = vpop.xlane.xlu0 %1934
    %v1936 = vsel %vm104, %v1932, 0.0
    %1937 = vadd.xlane.f32.xlu0 %v1936
    %v1938 = vpop.xlane.xlu0 %1937
    %v1939 = vmul.f32 %v1935, %v890
    %v1940 = vmul.f32 %v1938, %v890
    %v1941 = vadd.f32 %v1939, 1e-05
    %v1942 = vadd.f32 %v1940, 1e-05
    %v1943 = vrsqrt.pop %v1941
    %v1944 = vrsqrt.pop %v1942
    %v1945 = vmul.f32 %v1929, %v1943
    %v1946 = vmul.f32 %v1930, %v1944
    %v1947 = vlaneseq
    %v1948 = vshrl.u32 %v1947, 7
    %v1949 = vsub.s32 6, %v1948
    %v1950 = vrot.slane %v51, %v1949
    %v1951 = vmul.f32 %v1945, %v1950
    %v1952 = vmul.f32 %v1946, %v1950
    %v1953 = vlaneseq
    %v1954 = vshrl.u32 %v1953, 7
    %v1955 = vsub.s32 7, %v1954
    %v1956 = vrot.slane %v51, %v1955
    %v1957 = vadd.f32 %v1951, %v1956
    %v1958 = vadd.f32 %v1952, %v1956
    %1959 = vst.msk [vmem:[#allocation2] sm:$0xff] %vm104, %v1957
    %1960 = vst.msk [vmem:[#allocation2 + $0x8] sm:$0xff] %vm104, %v1958
    // Predicated region
    $region30: #{decoder_block.1} parent=1 // pred_check
      _
    $region31: #{decoder_block.1} parent=1 // pred_check_branch
      %1962 = sbr.rel (0) target = $region33
    $region32: #{decoder_block.1} parent=1 // pred_region
      %s1964 = ssub.s32 256, 256
      %1965 = vsyncadd [#allocation3], %s1964
      %s1966 = sshll.u32 [#allocation2], 4
      %s1967 = int_to_ptr.vmem [resolvable:$true] %s1966
      %1972 = dma.vmem_to_hbm [thread:$0]  %s1967, 256, %s7, [#allocation3], 128, 128, 8
    $region33: #{decoder_block.1} parent=1 // pred_fallthru
      _
    // Predicated region
    $region34: #{decoder_block.1} parent=1 // pred_check
      _
    $region35: #{decoder_block.1} parent=1 // pred_check_branch
      %1974 = sbr.rel (0) target = $region37
    $region36: #{decoder_block.1} parent=1 // pred_region
      %1975 = dma.done [#allocation3], 256
    $region37: #{decoder_block.1} parent=1 // pred_fallthru
      _
    %1976 = vsyncpa [#allocation3], 1

</llo_original>
